<compile_context>
chip_gen: v5e
topology: v5e:2x2
jax: 0.10.0
libtpu: 0.0.40
codegen_flags: <defaults>
</compile_context>

<pallas_src>
import functools

import jax
import jax.numpy as jnp
import numpy as np
from jax.experimental import pallas as pl
from jax.experimental.pallas import tpu as pltpu


# ----------------------------------------------------------------------------
# Pallas kernel: one fused matmul + sigmoid gate + ReLU-difference epilogue.
# ----------------------------------------------------------------------------
def repair_kernel(k_ref, x_ref, w_ref, b_ref, o_ref, *, d_out):
    """k_ref: (1,) f32 in SMEM;  x_ref: (TB, D_in);  w_ref: (D_in, Npad);
    b_ref: (1, Npad);  o_ref: (TB, D_out).  Column `d_out` of w/b is the g net;
    columns > d_out are zero padding (never stored)."""
    x = x_ref[...]

    # One MXU pass: columns [0, d_out) = p(x) pre-activation, column d_out = g logit.
    z = jnp.dot(x, w_ref[...], preferred_element_type=jnp.float32) + b_ref[...]

    K = k_ref[0]
    p = z[:, :d_out]                              # (TB, D_out) p(x)
    gz = z[:, d_out:d_out + 1]                    # (TB, 1) g-net logit
    t = K * jax.nn.sigmoid(gz) - K                # (TB, 1), always <= 0

    # ReLU-difference epilogue (kernel is HBM/step-overhead bound; VALU has slack).
    out = jax.nn.relu(p + t) - jax.nn.relu(-p + t)
    o_ref[...] = out.astype(o_ref.dtype)          # narrow (D_out-wide) store only


# ----------------------------------------------------------------------------
# Tiling helpers.
# ----------------------------------------------------------------------------
def _round_up(a, m):
    return ((a + m - 1) // m) * m


def _cdiv(a, b):
    return -(-a // b)


def _num_tensorcores():
    # v7x has 2 TensorCores per chip (megacore); v5e/v6e have 1.
    try:
        kind = str(jax.devices()[0].device_kind).lower()
    except Exception:
        return 1
    return 2 if ("v7" in kind or "7x" in kind) else 1


def _pick_batch_tile(B, num_cores, cap=2048):
    """Largest batch tile (multiple of 8, <= cap).

    Single-TC parts (v5e/v6e): minimize grid steps (grid=1 when B <= cap).
    Dual-TC parts (v7x): keep an even (>= 2) step count so both TensorCores get
    equal halves, while keeping tiles as large as the cap allows.
    """
    full = _round_up(B, 8)
    if num_cores <= 1 or full <= 8:
        return min(cap, full)
    steps = 2
    while _round_up(_cdiv(B, steps), 8) > cap:
        steps += 2
    return _round_up(_cdiv(B, steps), 8)


# ----------------------------------------------------------------------------
# Wrapper: weight fusion / padding, tiling, pallas_call.
# ----------------------------------------------------------------------------
def single_region_repair_net(x, c_w, c_b, g_w, g_b, K, *, block_b=None):
    """x: (B, D_in); c_w: (D_out, D_in); c_b: (D_out,); g_w: (1, D_in); g_b: (1,)."""
    B, D_in = x.shape
    D_out = c_w.shape[0]

    tb = block_b if block_b is not None else _pick_batch_tile(B, _num_tensorcores())
    tb = max(8, _round_up(min(tb, _round_up(B, 8)), 8))
    grid = _cdiv(B, tb)   # ragged tail handled by Pallas (OOB rows dropped on write)

    # Lane-dense fused weight [ c.T | wg.T | 0-pad ] -> (D_in, Npad), Npad % 128 == 0.
    # Transpose + cast happen once here, not per grid iteration in the kernel.
    n_pad = _round_up(D_out + 1, 128)
    w_fused = jnp.zeros((D_in, n_pad), jnp.float32)
    w_fused = w_fused.at[:, :D_out].set(c_w.astype(jnp.float32).T)
    w_fused = w_fused.at[:, D_out].set(g_w.astype(jnp.float32).reshape(-1))
    b_fused = jnp.zeros((1, n_pad), jnp.float32)
    b_fused = b_fused.at[0, :D_out].set(c_b.astype(jnp.float32))
    b_fused = b_fused.at[0, D_out].set(g_b.astype(jnp.float32).reshape(()))

    k_arr = jnp.asarray(K, dtype=jnp.float32).reshape(1)

    kernel = functools.partial(repair_kernel, d_out=D_out)

    return pl.pallas_call(
        kernel,
        out_shape=jax.ShapeDtypeStruct((B, D_out), x.dtype),
        grid_spec=pltpu.PrefetchScalarGridSpec(
            num_scalar_prefetch=0,
            grid=(grid,),
            in_specs=[
                pl.BlockSpec(memory_space=pltpu.MemorySpace.SMEM),  # K scalar
                pl.BlockSpec((tb, D_in), lambda i: (i, 0)),         # x batch tile
                pl.BlockSpec((D_in, n_pad), lambda i: (0, 0)),      # fused weight (resident)
                pl.BlockSpec((1, n_pad), lambda i: (0, 0)),         # fused bias (resident)
            ],
            out_specs=pl.BlockSpec((tb, D_out), lambda i: (i, 0)),  # narrow output
        ),
        compiler_params=pltpu.CompilerParams(
            dimension_semantics=("parallel",)),
    )(k_arr, x, w_fused, b_fused)


# ----------------------------------------------------------------------------
# Plain-JAX reference (mirrors the PyTorch forward exactly).
# ----------------------------------------------------------------------------
def reference(x, c_w, c_b, g_w, g_b, K):
    px = x @ c_w.T + c_b
    gx = jax.nn.sigmoid(x @ g_w.T + g_b)
    t = K * gx - K
    return jax.nn.relu(px + t) - jax.nn.relu(-px + t)


if __name__ == "__main__":
    D_in, D_out = 32, 16

    key = jax.random.PRNGKey(0)
    kc, kd, kgw, kgb, kx = jax.random.split(key, 5)

    # nn.Linear p: weight c (D_out, D_in), bias d (D_out,)
    c_w = jax.random.normal(kc, (D_out, D_in), dtype=jnp.float32) * 0.3
    c_b = jax.random.normal(kd, (D_out,), dtype=jnp.float32) * 0.1

    # Support net g: single linear unit + sigmoid (REASSURE's single-region gate).
    # TODO(synk): the module accepts an arbitrary support net g; modeled here as
    # one linear+sigmoid unit.
    g_w = jax.random.normal(kgw, (1, D_in), dtype=jnp.float32) * 0.3
    g_b = jax.random.normal(kgb, (1,), dtype=jnp.float32) * 0.1

    # K from __init__: LPs of c_i.x over the input region.  With the box
    # [-1, 1]^D_in as the boundary the LPs have the closed form
    # min c_i.x = -sum_j |c_ij|, so K = max_i (sum_j |c_ij| + |d_i|).
    # TODO(synk): general polytope boundaries need an LP solver (scipy.linprog);
    # this init-time scalar is outside the kernel hot path.
    c_np = np.asarray(c_w)
    d_np = np.asarray(c_b)
    K = float(np.max(np.abs(c_np).sum(axis=1) + np.abs(d_np)))

    # Case 1: auto-picked tile (grid=1 on single-TC parts, 2 even steps on v7x).
    # Case 2: forced small tile with a ragged tail (exercises the cdiv grid path).
    for B, blk in ((512, None), (200, 64)):
        kx, sub = jax.random.split(kx)
        x = jax.random.normal(sub, (B, D_in), dtype=jnp.float32)

        out = single_region_repair_net(x, c_w, c_b, g_w, g_b, K, block_b=blk)
        out = jax.block_until_ready(out)

        ref = reference(x, c_w, c_b, g_w, g_b, K)
        np.testing.assert_allclose(np.asarray(out), np.asarray(ref),
                                   rtol=1e-5, atol=1e-5)

    print("KERNEL_OK")
</pallas_src>

<mosaic_0001>
module attributes {stable_mosaic.version = 11 : i64} {
  func.func @repair_kernel(%arg0: i32, %arg1: memref<1xf32, #tpu.memory_space<smem>>, %arg2: memref<512x32xf32, #tpu.memory_space<vmem>>, %arg3: memref<32x128xf32, #tpu.memory_space<vmem>>, %arg4: memref<1x128xf32, #tpu.memory_space<vmem>>, %arg5: memref<512x16xf32, #tpu.memory_space<vmem>>) attributes {dimension_semantics = [#tpu.dimension_semantics<parallel>], iteration_bounds = array<i64: 1>, scalar_prefetch = 0 : i64, scratch_operands = 0 : i64, tpu.core_type = #tpu.core_type<tc>, window_params = [{transform_indices = @transform_0, window_bounds = array<i64: 1>}, {transform_indices = @transform_1, window_bounds = array<i64: 512, 32>}, {pipeline_mode = #tpu.pipeline_mode<synchronous>, transform_indices = @transform_2, window_bounds = array<i64: 32, 128>}, {pipeline_mode = #tpu.pipeline_mode<synchronous>, transform_indices = @transform_3, window_bounds = array<i64: 1, 128>}, {transform_indices = @transform_4, window_bounds = array<i64: 512, 16>}]} {
    %c0 = arith.constant 0 : index
    %c0_0 = arith.constant 0 : index
    %0 = vector.load %arg2[%c0, %c0_0] : memref<512x32xf32, #tpu.memory_space<vmem>>, vector<512x32xf32>
    %c0_1 = arith.constant 0 : index
    %c0_2 = arith.constant 0 : index
    %1 = vector.load %arg3[%c0_1, %c0_2] : memref<32x128xf32, #tpu.memory_space<vmem>>, vector<32x128xf32>
    %cst = arith.constant dense<0.000000e+00> : vector<512x128xf32>
    %2 = tpu.matmul %0, %1, %cst {dimension_numbers = #tpu.dot_dimension_numbers<[1], [0], [0], [1], [0, 0, 1, 1], [], []>} : vector<512x32xf32>, vector<32x128xf32>, vector<512x128xf32> -> vector<512x128xf32>
    %c0_3 = arith.constant 0 : index
    %c0_4 = arith.constant 0 : index
    %3 = vector.load %arg4[%c0_3, %c0_4] : memref<1x128xf32, #tpu.memory_space<vmem>>, vector<1x128xf32>
    %4 = vector.broadcast %3 : vector<1x128xf32> to vector<512x128xf32>
    %5 = arith.addf %2, %4 : vector<512x128xf32>
    %c0_5 = arith.constant 0 : index
    %6 = memref.load %arg1[%c0_5] : memref<1xf32, #tpu.memory_space<smem>>
    %7 = vector.extract_strided_slice %5 {offsets = [0, 0], sizes = [512, 16], strides = [1, 1]} : vector<512x128xf32> to vector<512x16xf32>
    %8 = vector.extract_strided_slice %5 {offsets = [0, 16], sizes = [512, 1], strides = [1, 1]} : vector<512x128xf32> to vector<512x1xf32>
    %9 = arith.negf %8 : vector<512x1xf32>
    %10 = math.exp %9 : vector<512x1xf32>
    %cst_6 = arith.constant 1.000000e+00 : f32
    %11 = vector.broadcast %cst_6 : f32 to vector<512x1xf32>
    %12 = arith.addf %11, %10 : vector<512x1xf32>
    %13 = arith.divf %11, %12 : vector<512x1xf32>
    %14 = vector.broadcast %6 : f32 to vector<512x1xf32>
    %15 = arith.mulf %14, %13 : vector<512x1xf32>
    %16 = vector.broadcast %6 : f32 to vector<512x1xf32>
    %17 = arith.subf %15, %16 : vector<512x1xf32>
    %18 = vector.broadcast %17 : vector<512x1xf32> to vector<512x16xf32>
    %19 = arith.addf %7, %18 : vector<512x16xf32>
    %cst_7 = arith.constant 0.000000e+00 : f32
    %20 = vector.broadcast %cst_7 : f32 to vector<512x16xf32>
    %21 = arith.maximumf %19, %20 : vector<512x16xf32>
    %cst_8 = arith.constant 0.000000e+00 : f32
    %22 = vector.broadcast %cst_8 : f32 to vector<512x16xf32>
    %23 = arith.subf %22, %7 : vector<512x16xf32>
    %24 = vector.broadcast %17 : vector<512x1xf32> to vector<512x16xf32>
    %25 = arith.addf %23, %24 : vector<512x16xf32>
    %cst_9 = arith.constant 0.000000e+00 : f32
    %26 = vector.broadcast %cst_9 : f32 to vector<512x16xf32>
    %27 = arith.maximumf %25, %26 : vector<512x16xf32>
    %28 = arith.subf %21, %27 : vector<512x16xf32>
    %c0_10 = arith.constant 0 : index
    %c0_11 = arith.constant 0 : index
    %29 = vector.load %arg5[%c0_10, %c0_11] : memref<512x16xf32, #tpu.memory_space<vmem>>, vector<512x16xf32>
    tpu.vector_store %arg5[%c0_10, %c0_11], %28 {strides = array<i32>} : memref<512x16xf32, #tpu.memory_space<vmem>>, vector<512x16xf32>,
    return
  }
  func.func @transform_0(%arg0: i32) -> i32 {
    %c0_i32 = arith.constant 0 : i32
    %c0_i32_0 = arith.constant 0 : i32
    return %c0_i32 : i32
  }
  func.func @transform_1(%arg0: i32) -> (i32, i32) {
    %c0_i32 = arith.constant 0 : i32
    %c0_i32_0 = arith.constant 0 : i32
    return %arg0, %c0_i32 : i32, i32
  }
  func.func @transform_2(%arg0: i32) -> (i32, i32) {
    %c0_i32 = arith.constant 0 : i32
    %c0_i32_0 = arith.constant 0 : i32
    %c0_i32_1 = arith.constant 0 : i32
    return %c0_i32, %c0_i32_0 : i32, i32
  }
  func.func @transform_3(%arg0: i32) -> (i32, i32) {
    %c0_i32 = arith.constant 0 : i32
    %c0_i32_0 = arith.constant 0 : i32
    %c0_i32_1 = arith.constant 0 : i32
    return %c0_i32, %c0_i32_0 : i32, i32
  }
  func.func @transform_4(%arg0: i32) -> (i32, i32) {
    %c0_i32 = arith.constant 0 : i32
    %c0_i32_0 = arith.constant 0 : i32
    return %arg0, %c0_i32 : i32, i32
  }
}

</mosaic_0001>

<llo_original>
// kernel: tpu_custom_call.1
$region0: #{tpu_custom_call.1}
  #allocation0 [shape = 'u32[]', space=smem, size = 0x4, offset = 0x4, fixed_abs, tag = 'smem constant byte address 0x4 - core index']
  #allocation1 [shape = 'u32[72,128]{1,0:T(1,128)}', space=vmem, size = 0x9000, scoped, tag = 'internal scratch']
  #allocation2 [shape = 'f32[1]{0:T(128)S(6)}', space=smem, size = 0x200, scoped, tag = 'scoped memory for tpu_custom_call.1']
  %s0 = inlined_call_operand.<no memory space> [shape: f32[1], index: 0, kind: input, shape index: {}]
  %s1 = inlined_call_operand.vmem [shape: f32[512,32], index: 1, kind: input, shape index: {}]
  %s2 = inlined_call_operand.vmem [shape: f32[32,128], index: 2, kind: input, shape index: {}]
  %s3 = inlined_call_operand.vmem [shape: f32[1,128], index: 3, kind: input, shape index: {}]
  %s4 = inlined_call_operand.vmem [shape: f32[512,16], index: 4, kind: output, shape index: {}]
  %s5 = sld [smem:[#allocation0]]
  $region26: #{tpu_custom_call.1} parent=0
    _
  %s7 = ssub.s32 1, %s5
  %s8 = scalar_select 0, %s7, %s5
  %9 = sst [smem:[#allocation2]] %s0
  // Predicated region
  $region2: #{tpu_custom_call.1} parent=0 // pred_check
    _
  $region3: #{tpu_custom_call.1} parent=0 // pred_check_branch
    %11 = sbr.rel (0) target = $region5
  $region4: #{tpu_custom_call.1} parent=0 // pred_region
    _
  $region5: #{tpu_custom_call.1} parent=0 // pred_fallthru
    _
  // Predicated region
  $region6: #{tpu_custom_call.1} parent=0 // pred_check
    _
  $region7: #{tpu_custom_call.1} parent=0 // pred_check_branch
    %13 = sbr.rel (0) target = $region9
  $region8: #{tpu_custom_call.1} parent=0 // pred_region
    _
  $region9: #{tpu_custom_call.1} parent=0 // pred_fallthru
    _
  // Predicated region
  $region10: #{tpu_custom_call.1} parent=0 // pred_check
    _
  $region11: #{tpu_custom_call.1} parent=0 // pred_check_branch
    %15 = sbr.rel (0) target = $region13
  $region12: #{tpu_custom_call.1} parent=0 // pred_region
    _
  $region13: #{tpu_custom_call.1} parent=0 // pred_fallthru
    _
  // Predicated region
  $region14: #{tpu_custom_call.1} parent=0 // pred_check
    _
  $region15: #{tpu_custom_call.1} parent=0 // pred_check_branch
    %17 = sbr.rel (0) target = $region17
  $region16: #{tpu_custom_call.1} parent=0 // pred_region
    _
  $region17: #{tpu_custom_call.1} parent=0 // pred_fallthru
    _
  %v18 = vld [vmem:[%s1] sm:$0xff]
  %v19 = vld [vmem:[%s1 + $0x8] sm:$0xff]
  %v20 = vld [vmem:[%s1 + $0x10] sm:$0xff]
  %v21 = vld [vmem:[%s1 + $0x18] sm:$0xff]
  %v22 = vld [vmem:[%s1 + $0x20] sm:$0xff]
  %v23 = vld [vmem:[%s1 + $0x28] sm:$0xff]
  %v24 = vld [vmem:[%s1 + $0x30] sm:$0xff]
  %v25 = vld [vmem:[%s1 + $0x38] sm:$0xff]
  %v26 = vld [vmem:[%s1 + $0x40] sm:$0xff]
  %v27 = vld [vmem:[%s1 + $0x48] sm:$0xff]
  %v28 = vld [vmem:[%s1 + $0x50] sm:$0xff]
  %v29 = vld [vmem:[%s1 + $0x58] sm:$0xff]
  %v30 = vld [vmem:[%s1 + $0x60] sm:$0xff]
  %v31 = vld [vmem:[%s1 + $0x68] sm:$0xff]
  %v32 = vld [vmem:[%s1 + $0x70] sm:$0xff]
  %v33 = vld [vmem:[%s1 + $0x78] sm:$0xff]
  %v34 = vld [vmem:[%s1 + $0x80] sm:$0xff]
  %v35 = vld [vmem:[%s1 + $0x88] sm:$0xff]
  %v36 = vld [vmem:[%s1 + $0x90] sm:$0xff]
  %v37 = vld [vmem:[%s1 + $0x98] sm:$0xff]
  %v38 = vld [vmem:[%s1 + $0xa0] sm:$0xff]
  %v39 = vld [vmem:[%s1 + $0xa8] sm:$0xff]
  %v40 = vld [vmem:[%s1 + $0xb0] sm:$0xff]
  %v41 = vld [vmem:[%s1 + $0xb8] sm:$0xff]
  %v42 = vld [vmem:[%s1 + $0xc0] sm:$0xff]
  %v43 = vld [vmem:[%s1 + $0xc8] sm:$0xff]
  %v44 = vld [vmem:[%s1 + $0xd0] sm:$0xff]
  %v45 = vld [vmem:[%s1 + $0xd8] sm:$0xff]
  %v46 = vld [vmem:[%s1 + $0xe0] sm:$0xff]
  %v47 = vld [vmem:[%s1 + $0xe8] sm:$0xff]
  %v48 = vld [vmem:[%s1 + $0xf0] sm:$0xff]
  %v49 = vld [vmem:[%s1 + $0xf8] sm:$0xff]
  %v50 = vld [vmem:[%s1 + $0x100] sm:$0xff]
  %v51 = vld [vmem:[%s1 + $0x108] sm:$0xff]
  %v52 = vld [vmem:[%s1 + $0x110] sm:$0xff]
  %v53 = vld [vmem:[%s1 + $0x118] sm:$0xff]
  %v54 = vld [vmem:[%s1 + $0x120] sm:$0xff]
  %v55 = vld [vmem:[%s1 + $0x128] sm:$0xff]
  %v56 = vld [vmem:[%s1 + $0x130] sm:$0xff]
  %v57 = vld [vmem:[%s1 + $0x138] sm:$0xff]
  %v58 = vld [vmem:[%s1 + $0x140] sm:$0xff]
  %v59 = vld [vmem:[%s1 + $0x148] sm:$0xff]
  %v60 = vld [vmem:[%s1 + $0x150] sm:$0xff]
  %v61 = vld [vmem:[%s1 + $0x158] sm:$0xff]
  %v62 = vld [vmem:[%s1 + $0x160] sm:$0xff]
  %v63 = vld [vmem:[%s1 + $0x168] sm:$0xff]
  %v64 = vld [vmem:[%s1 + $0x170] sm:$0xff]
  %v65 = vld [vmem:[%s1 + $0x178] sm:$0xff]
  %v66 = vld [vmem:[%s1 + $0x180] sm:$0xff]
  %v67 = vld [vmem:[%s1 + $0x188] sm:$0xff]
  %v68 = vld [vmem:[%s1 + $0x190] sm:$0xff]
  %v69 = vld [vmem:[%s1 + $0x198] sm:$0xff]
  %v70 = vld [vmem:[%s1 + $0x1a0] sm:$0xff]
  %v71 = vld [vmem:[%s1 + $0x1a8] sm:$0xff]
  %v72 = vld [vmem:[%s1 + $0x1b0] sm:$0xff]
  %v73 = vld [vmem:[%s1 + $0x1b8] sm:$0xff]
  %v74 = vld [vmem:[%s1 + $0x1c0] sm:$0xff]
  %v75 = vld [vmem:[%s1 + $0x1c8] sm:$0xff]
  %v76 = vld [vmem:[%s1 + $0x1d0] sm:$0xff]
  %v77 = vld [vmem:[%s1 + $0x1d8] sm:$0xff]
  %v78 = vld [vmem:[%s1 + $0x1e0] sm:$0xff]
  %v79 = vld [vmem:[%s1 + $0x1e8] sm:$0xff]
  %v80 = vld [vmem:[%s1 + $0x1f0] sm:$0xff]
  %v81 = vld [vmem:[%s1 + $0x1f8] sm:$0xff]
  %v82 = vld [vmem:[%s2] sm:$0xff]
  %v83 = vld [vmem:[%s2 + $0x8] sm:$0xff]
  %v84 = vld [vmem:[%s2 + $0x10] sm:$0xff]
  %v85 = vld [vmem:[%s2 + $0x18] sm:$0xff]
  %v86 = vld [vmem:[%s3] sm:$0x1]
  %v88 = vperm.slane %v86, 0
  %vm90 = vcmask 261120
  %v92 = vsel %vm90, %v18, 0
  %v95 = vsel %vm90, %v19, 0
  %v98 = vsel %vm90, %v20, 0
  %v101 = vsel %vm90, %v21, 0
  %v104 = vsel %vm90, %v22, 0
  %v107 = vsel %vm90, %v23, 0
  %v110 = vsel %vm90, %v24, 0
  %v113 = vsel %vm90, %v25, 0
  %v116 = vsel %vm90, %v26, 0
  %v119 = vsel %vm90, %v27, 0
  %v122 = vsel %vm90, %v28, 0
  %v125 = vsel %vm90, %v29, 0
  %v128 = vsel %vm90, %v30, 0
  %v131 = vsel %vm90, %v31, 0
  %v134 = vsel %vm90, %v32, 0
  %v137 = vsel %vm90, %v33, 0
  %v140 = vsel %vm90, %v34, 0
  %v143 = vsel %vm90, %v35, 0
  %v146 = vsel %vm90, %v36, 0
  %v149 = vsel %vm90, %v37, 0
  %v152 = vsel %vm90, %v38, 0
  %v155 = vsel %vm90, %v39, 0
  %v158 = vsel %vm90, %v40, 0
  %v161 = vsel %vm90, %v41, 0
  %v164 = vsel %vm90, %v42, 0
  %v167 = vsel %vm90, %v43, 0
  %v170 = vsel %vm90, %v44, 0
  %v173 = vsel %vm90, %v45, 0
  %v176 = vsel %vm90, %v46, 0
  %v179 = vsel %vm90, %v47, 0
  %v182 = vsel %vm90, %v48, 0
  %v185 = vsel %vm90, %v49, 0
  %v188 = vsel %vm90, %v50, 0
  %v191 = vsel %vm90, %v51, 0
  %v194 = vsel %vm90, %v52, 0
  %v197 = vsel %vm90, %v53, 0
  %v200 = vsel %vm90, %v54, 0
  %v203 = vsel %vm90, %v55, 0
  %v206 = vsel %vm90, %v56, 0
  %v209 = vsel %vm90, %v57, 0
  %v212 = vsel %vm90, %v58, 0
  %v215 = vsel %vm90, %v59, 0
  %v218 = vsel %vm90, %v60, 0
  %v221 = vsel %vm90, %v61, 0
  %v224 = vsel %vm90, %v62, 0
  %v227 = vsel %vm90, %v63, 0
  %v230 = vsel %vm90, %v64, 0
  %v233 = vsel %vm90, %v65, 0
  %v236 = vsel %vm90, %v66, 0
  %v239 = vsel %vm90, %v67, 0
  %v242 = vsel %vm90, %v68, 0
  %v245 = vsel %vm90, %v69, 0
  %v248 = vsel %vm90, %v70, 0
  %v251 = vsel %vm90, %v71, 0
  %v254 = vsel %vm90, %v72, 0
  %v257 = vsel %vm90, %v73, 0
  %v260 = vsel %vm90, %v74, 0
  %v263 = vsel %vm90, %v75, 0
  %v266 = vsel %vm90, %v76, 0
  %v269 = vsel %vm90, %v77, 0
  %v272 = vsel %vm90, %v78, 0
  %v275 = vsel %vm90, %v79, 0
  %v278 = vsel %vm90, %v80, 0
  %v281 = vsel %vm90, %v81, 0
  %283 = vmatpush.msra.mxu0 0.0
  %284 = vmatpush.msra.mxu0 0.0
  %285 = vmatpush.msra.mxu0 0.0
  %286 = vmatpush.msra.mxu0 0.0
  %287 = vmatpush.msra.mxu0 0.0
  %288 = vmatpush.msra.mxu0 0.0
  %289 = vmatpush.msra.mxu0 0.0
  %290 = vmatpush.msra.mxu0 0.0
  %291 = vmatpush.msra.mxu0 0.0
  %292 = vmatpush.msra.mxu0 0.0
  %293 = vmatpush.msra.mxu0 0.0
  %294 = vmatpush.msra.mxu0 0.0
  %295 = vmatpush.msra.mxu0 %v85
  %296 = vmatpush.msra.mxu0 %v84
  %297 = vmatpush.msra.mxu0 %v83
  %298 = vmatpush.msra.mxu0 %v82
  %299 = vmatmul.f32.gmra.mxu0 %v92
  %v300 = vpop.f32.mrf.mxu0
  %v301 = vadd.f32 %v88, %v300
  %302 = vmatmul.f32.gmra.mxu0 %v95
  %v303 = vpop.f32.mrf.mxu0
  %v304 = vadd.f32 %v88, %v303
  %305 = vmatmul.f32.gmra.mxu0 %v98
  %v306 = vpop.f32.mrf.mxu0
  %v307 = vadd.f32 %v88, %v306
  %308 = vmatmul.f32.gmra.mxu0 %v101
  %v309 = vpop.f32.mrf.mxu0
  %v310 = vadd.f32 %v88, %v309
  %311 = vmatmul.f32.gmra.mxu0 %v104
  %v312 = vpop.f32.mrf.mxu0
  %v313 = vadd.f32 %v88, %v312
  %314 = vmatmul.f32.gmra.mxu0 %v107
  %v315 = vpop.f32.mrf.mxu0
  %v316 = vadd.f32 %v88, %v315
  %317 = vmatmul.f32.gmra.mxu0 %v110
  %v318 = vpop.f32.mrf.mxu0
  %v319 = vadd.f32 %v88, %v318
  %320 = vmatmul.f32.gmra.mxu0 %v113
  %v321 = vpop.f32.mrf.mxu0
  %v322 = vadd.f32 %v88, %v321
  %323 = vmatmul.f32.gmra.mxu0 %v116
  %v324 = vpop.f32.mrf.mxu0
  %v325 = vadd.f32 %v88, %v324
  %326 = vmatmul.f32.gmra.mxu0 %v119
  %v327 = vpop.f32.mrf.mxu0
  %v328 = vadd.f32 %v88, %v327
  %329 = vmatmul.f32.gmra.mxu0 %v122
  %v330 = vpop.f32.mrf.mxu0
  %v331 = vadd.f32 %v88, %v330
  %332 = vmatmul.f32.gmra.mxu0 %v125
  %v333 = vpop.f32.mrf.mxu0
  %v334 = vadd.f32 %v88, %v333
  %335 = vmatmul.f32.gmra.mxu0 %v128
  %v336 = vpop.f32.mrf.mxu0
  %v337 = vadd.f32 %v88, %v336
  %338 = vmatmul.f32.gmra.mxu0 %v131
  %v339 = vpop.f32.mrf.mxu0
  %v340 = vadd.f32 %v88, %v339
  %341 = vmatmul.f32.gmra.mxu0 %v134
  %v342 = vpop.f32.mrf.mxu0
  %v343 = vadd.f32 %v88, %v342
  %344 = vmatmul.f32.gmra.mxu0 %v137
  %v345 = vpop.f32.mrf.mxu0
  %v346 = vadd.f32 %v88, %v345
  %347 = vmatmul.f32.gmra.mxu0 %v140
  %v348 = vpop.f32.mrf.mxu0
  %v349 = vadd.f32 %v88, %v348
  %350 = vmatmul.f32.gmra.mxu0 %v143
  %v351 = vpop.f32.mrf.mxu0
  %v352 = vadd.f32 %v88, %v351
  %353 = vmatmul.f32.gmra.mxu0 %v146
  %v354 = vpop.f32.mrf.mxu0
  %v355 = vadd.f32 %v88, %v354
  %356 = vmatmul.f32.gmra.mxu0 %v149
  %v357 = vpop.f32.mrf.mxu0
  %v358 = vadd.f32 %v88, %v357
  %359 = vmatmul.f32.gmra.mxu0 %v152
  %v360 = vpop.f32.mrf.mxu0
  %v361 = vadd.f32 %v88, %v360
  %362 = vmatmul.f32.gmra.mxu0 %v155
  %v363 = vpop.f32.mrf.mxu0
  %v364 = vadd.f32 %v88, %v363
  %365 = vmatmul.f32.gmra.mxu0 %v158
  %v366 = vpop.f32.mrf.mxu0
  %v367 = vadd.f32 %v88, %v366
  %368 = vmatmul.f32.gmra.mxu0 %v161
  %v369 = vpop.f32.mrf.mxu0
  %v370 = vadd.f32 %v88, %v369
  %371 = vmatmul.f32.gmra.mxu0 %v164
  %v372 = vpop.f32.mrf.mxu0
  %v373 = vadd.f32 %v88, %v372
  %374 = vmatmul.f32.gmra.mxu0 %v167
  %v375 = vpop.f32.mrf.mxu0
  %v376 = vadd.f32 %v88, %v375
  %377 = vmatmul.f32.gmra.mxu0 %v170
  %v378 = vpop.f32.mrf.mxu0
  %v379 = vadd.f32 %v88, %v378
  %380 = vmatmul.f32.gmra.mxu0 %v173
  %v381 = vpop.f32.mrf.mxu0
  %v382 = vadd.f32 %v88, %v381
  %383 = vmatmul.f32.gmra.mxu0 %v176
  %v384 = vpop.f32.mrf.mxu0
  %v385 = vadd.f32 %v88, %v384
  %386 = vmatmul.f32.gmra.mxu0 %v179
  %v387 = vpop.f32.mrf.mxu0
  %v388 = vadd.f32 %v88, %v387
  %389 = vmatmul.f32.gmra.mxu0 %v182
  %v390 = vpop.f32.mrf.mxu0
  %v391 = vadd.f32 %v88, %v390
  %392 = vmatmul.f32.gmra.mxu0 %v185
  %v393 = vpop.f32.mrf.mxu0
  %v394 = vadd.f32 %v88, %v393
  %395 = vmatmul.f32.gmra.mxu0 %v188
  %v396 = vpop.f32.mrf.mxu0
  %v397 = vadd.f32 %v88, %v396
  %398 = vmatmul.f32.gmra.mxu0 %v191
  %v399 = vpop.f32.mrf.mxu0
  %v400 = vadd.f32 %v88, %v399
  %401 = vmatmul.f32.gmra.mxu0 %v194
  %v402 = vpop.f32.mrf.mxu0
  %v403 = vadd.f32 %v88, %v402
  %404 = vmatmul.f32.gmra.mxu0 %v197
  %v405 = vpop.f32.mrf.mxu0
  %v406 = vadd.f32 %v88, %v405
  %407 = vmatmul.f32.gmra.mxu0 %v200
  %v408 = vpop.f32.mrf.mxu0
  %v409 = vadd.f32 %v88, %v408
  %410 = vmatmul.f32.gmra.mxu0 %v203
  %v411 = vpop.f32.mrf.mxu0
  %v412 = vadd.f32 %v88, %v411
  %413 = vmatmul.f32.gmra.mxu0 %v206
  %v414 = vpop.f32.mrf.mxu0
  %v415 = vadd.f32 %v88, %v414
  %416 = vmatmul.f32.gmra.mxu0 %v209
  %v417 = vpop.f32.mrf.mxu0
  %v418 = vadd.f32 %v88, %v417
  %419 = vmatmul.f32.gmra.mxu0 %v212
  %v420 = vpop.f32.mrf.mxu0
  %v421 = vadd.f32 %v88, %v420
  %422 = vmatmul.f32.gmra.mxu0 %v215
  %v423 = vpop.f32.mrf.mxu0
  %v424 = vadd.f32 %v88, %v423
  %425 = vmatmul.f32.gmra.mxu0 %v218
  %v426 = vpop.f32.mrf.mxu0
  %v427 = vadd.f32 %v88, %v426
  %428 = vmatmul.f32.gmra.mxu0 %v221
  %v429 = vpop.f32.mrf.mxu0
  %v430 = vadd.f32 %v88, %v429
  %431 = vmatmul.f32.gmra.mxu0 %v224
  %v432 = vpop.f32.mrf.mxu0
  %v433 = vadd.f32 %v88, %v432
  %434 = vmatmul.f32.gmra.mxu0 %v227
  %v435 = vpop.f32.mrf.mxu0
  %v436 = vadd.f32 %v88, %v435
  %437 = vmatmul.f32.gmra.mxu0 %v230
  %v438 = vpop.f32.mrf.mxu0
  %v439 = vadd.f32 %v88, %v438
  %440 = vmatmul.f32.gmra.mxu0 %v233
  %v441 = vpop.f32.mrf.mxu0
  %v442 = vadd.f32 %v88, %v441
  %443 = vmatmul.f32.gmra.mxu0 %v236
  %v444 = vpop.f32.mrf.mxu0
  %v445 = vadd.f32 %v88, %v444
  %446 = vmatmul.f32.gmra.mxu0 %v239
  %v447 = vpop.f32.mrf.mxu0
  %v448 = vadd.f32 %v88, %v447
  %449 = vmatmul.f32.gmra.mxu0 %v242
  %v450 = vpop.f32.mrf.mxu0
  %v451 = vadd.f32 %v88, %v450
  %452 = vmatmul.f32.gmra.mxu0 %v245
  %v453 = vpop.f32.mrf.mxu0
  %v454 = vadd.f32 %v88, %v453
  %455 = vmatmul.f32.gmra.mxu0 %v248
  %v456 = vpop.f32.mrf.mxu0
  %v457 = vadd.f32 %v88, %v456
  %458 = vmatmul.f32.gmra.mxu0 %v251
  %v459 = vpop.f32.mrf.mxu0
  %v460 = vadd.f32 %v88, %v459
  %461 = vmatmul.f32.gmra.mxu0 %v254
  %v462 = vpop.f32.mrf.mxu0
  %v463 = vadd.f32 %v88, %v462
  %464 = vmatmul.f32.gmra.mxu0 %v257
  %v465 = vpop.f32.mrf.mxu0
  %v466 = vadd.f32 %v88, %v465
  %467 = vmatmul.f32.gmra.mxu0 %v260
  %v468 = vpop.f32.mrf.mxu0
  %v469 = vadd.f32 %v88, %v468
  %470 = vmatmul.f32.gmra.mxu0 %v263
  %v471 = vpop.f32.mrf.mxu0
  %v472 = vadd.f32 %v88, %v471
  %473 = vmatmul.f32.gmra.mxu0 %v266
  %v474 = vpop.f32.mrf.mxu0
  %v475 = vadd.f32 %v88, %v474
  %476 = vmatmul.f32.gmra.mxu0 %v269
  %v477 = vpop.f32.mrf.mxu0
  %v478 = vadd.f32 %v88, %v477
  %479 = vmatmul.f32.gmra.mxu0 %v272
  %v480 = vpop.f32.mrf.mxu0
  %v481 = vadd.f32 %v88, %v480
  %482 = vmatmul.f32.gmra.mxu0 %v275
  %v483 = vpop.f32.mrf.mxu0
  %v484 = vadd.f32 %v88, %v483
  %485 = vmatmul.f32.gmra.mxu0 %v278
  %v486 = vpop.f32.mrf.mxu0
  %v487 = vadd.f32 %v88, %v486
  %488 = vmatmul.f32.gmra.mxu0 %v281
  %v489 = vpop.f32.mrf.mxu0
  %v490 = vadd.f32 %v88, %v489
  %491 = vdwg.mxu0
  %s492 = sld [smem:[#allocation2]]
  %v493 = vxor.u32 %v301, 2147483648
  %v494 = vxor.u32 %v304, 2147483648
  %v495 = vxor.u32 %v307, 2147483648
  %v496 = vxor.u32 %v310, 2147483648
  %v497 = vxor.u32 %v313, 2147483648
  %v498 = vxor.u32 %v316, 2147483648
  %v499 = vxor.u32 %v319, 2147483648
  %v500 = vxor.u32 %v322, 2147483648
  %v501 = vxor.u32 %v325, 2147483648
  %v502 = vxor.u32 %v328, 2147483648
  %v503 = vxor.u32 %v331, 2147483648
  %v504 = vxor.u32 %v334, 2147483648
  %v505 = vxor.u32 %v337, 2147483648
  %v506 = vxor.u32 %v340, 2147483648
  %v507 = vxor.u32 %v343, 2147483648
  %v508 = vxor.u32 %v346, 2147483648
  %v509 = vxor.u32 %v349, 2147483648
  %v510 = vxor.u32 %v352, 2147483648
  %v511 = vxor.u32 %v355, 2147483648
  %v512 = vxor.u32 %v358, 2147483648
  %v513 = vxor.u32 %v361, 2147483648
  %v514 = vxor.u32 %v364, 2147483648
  %v515 = vxor.u32 %v367, 2147483648
  %v516 = vxor.u32 %v370, 2147483648
  %v517 = vxor.u32 %v373, 2147483648
  %v518 = vxor.u32 %v376, 2147483648
  %v519 = vxor.u32 %v379, 2147483648
  %v520 = vxor.u32 %v382, 2147483648
  %v521 = vxor.u32 %v385, 2147483648
  %v522 = vxor.u32 %v388, 2147483648
  %v523 = vxor.u32 %v391, 2147483648
  %v524 = vxor.u32 %v394, 2147483648
  %v525 = vxor.u32 %v397, 2147483648
  %v526 = vxor.u32 %v400, 2147483648
  %v527 = vxor.u32 %v403, 2147483648
  %v528 = vxor.u32 %v406, 2147483648
  %v529 = vxor.u32 %v409, 2147483648
  %v530 = vxor.u32 %v412, 2147483648
  %v531 = vxor.u32 %v415, 2147483648
  %v532 = vxor.u32 %v418, 2147483648
  %v533 = vxor.u32 %v421, 2147483648
  %v534 = vxor.u32 %v424, 2147483648
  %v535 = vxor.u32 %v427, 2147483648
  %v536 = vxor.u32 %v430, 2147483648
  %v537 = vxor.u32 %v433, 2147483648
  %v538 = vxor.u32 %v436, 2147483648
  %v539 = vxor.u32 %v439, 2147483648
  %v540 = vxor.u32 %v442, 2147483648
  %v541 = vxor.u32 %v445, 2147483648
  %v542 = vxor.u32 %v448, 2147483648
  %v543 = vxor.u32 %v451, 2147483648
  %v544 = vxor.u32 %v454, 2147483648
  %v545 = vxor.u32 %v457, 2147483648
  %v546 = vxor.u32 %v460, 2147483648
  %v547 = vxor.u32 %v463, 2147483648
  %v548 = vxor.u32 %v466, 2147483648
  %v549 = vxor.u32 %v469, 2147483648
  %v550 = vxor.u32 %v472, 2147483648
  %v551 = vxor.u32 %v475, 2147483648
  %v552 = vxor.u32 %v478, 2147483648
  %v553 = vxor.u32 %v481, 2147483648
  %v554 = vxor.u32 %v484, 2147483648
  %v555 = vxor.u32 %v487, 2147483648
  %v556 = vxor.u32 %v490, 2147483648
  %v557 = vmul.f32 %v493, 1.442695
  %v558 = vpow.pop %v557
  %v559 = vmul.f32 %v494, 1.442695
  %v560 = vpow.pop %v559
  %v561 = vmul.f32 %v495, 1.442695
  %v562 = vpow.pop %v561
  %v563 = vmul.f32 %v496, 1.442695
  %v564 = vpow.pop %v563
  %v565 = vmul.f32 %v497, 1.442695
  %v566 = vpow.pop %v565
  %v567 = vmul.f32 %v498, 1.442695
  %v568 = vpow.pop %v567
  %v569 = vmul.f32 %v499, 1.442695
  %v570 = vpow.pop %v569
  %v571 = vmul.f32 %v500, 1.442695
  %v572 = vpow.pop %v571
  %v573 = vmul.f32 %v501, 1.442695
  %v574 = vpow.pop %v573
  %v575 = vmul.f32 %v502, 1.442695
  %v576 = vpow.pop %v575
  %v577 = vmul.f32 %v503, 1.442695
  %v578 = vpow.pop %v577
  %v579 = vmul.f32 %v504, 1.442695
  %v580 = vpow.pop %v579
  %v581 = vmul.f32 %v505, 1.442695
  %v582 = vpow.pop %v581
  %v583 = vmul.f32 %v506, 1.442695
  %v584 = vpow.pop %v583
  %v585 = vmul.f32 %v507, 1.442695
  %v586 = vpow.pop %v585
  %v587 = vmul.f32 %v508, 1.442695
  %v588 = vpow.pop %v587
  %v589 = vmul.f32 %v509, 1.442695
  %v590 = vpow.pop %v589
  %v591 = vmul.f32 %v510, 1.442695
  %v592 = vpow.pop %v591
  %v593 = vmul.f32 %v511, 1.442695
  %v594 = vpow.pop %v593
  %v595 = vmul.f32 %v512, 1.442695
  %v596 = vpow.pop %v595
  %v597 = vmul.f32 %v513, 1.442695
  %v598 = vpow.pop %v597
  %v599 = vmul.f32 %v514, 1.442695
  %v600 = vpow.pop %v599
  %v601 = vmul.f32 %v515, 1.442695
  %v602 = vpow.pop %v601
  %v603 = vmul.f32 %v516, 1.442695
  %v604 = vpow.pop %v603
  %v605 = vmul.f32 %v517, 1.442695
  %v606 = vpow.pop %v605
  %v607 = vmul.f32 %v518, 1.442695
  %v608 = vpow.pop %v607
  %v609 = vmul.f32 %v519, 1.442695
  %v610 = vpow.pop %v609
  %v611 = vmul.f32 %v520, 1.442695
  %v612 = vpow.pop %v611
  %v613 = vmul.f32 %v521, 1.442695
  %v614 = vpow.pop %v613
  %v615 = vmul.f32 %v522, 1.442695
  %v616 = vpow.pop %v615
  %v617 = vmul.f32 %v523, 1.442695
  %v618 = vpow.pop %v617
  %v619 = vmul.f32 %v524, 1.442695
  %v620 = vpow.pop %v619
  %v621 = vmul.f32 %v525, 1.442695
  %v622 = vpow.pop %v621
  %v623 = vmul.f32 %v526, 1.442695
  %v624 = vpow.pop %v623
  %v625 = vmul.f32 %v527, 1.442695
  %v626 = vpow.pop %v625
  %v627 = vmul.f32 %v528, 1.442695
  %v628 = vpow.pop %v627
  %v629 = vmul.f32 %v529, 1.442695
  %v630 = vpow.pop %v629
  %v631 = vmul.f32 %v530, 1.442695
  %v632 = vpow.pop %v631
  %v633 = vmul.f32 %v531, 1.442695
  %v634 = vpow.pop %v633
  %v635 = vmul.f32 %v532, 1.442695
  %v636 = vpow.pop %v635
  %v637 = vmul.f32 %v533, 1.442695
  %v638 = vpow.pop %v637
  %v639 = vmul.f32 %v534, 1.442695
  %v640 = vpow.pop %v639
  %v641 = vmul.f32 %v535, 1.442695
  %v642 = vpow.pop %v641
  %v643 = vmul.f32 %v536, 1.442695
  %v644 = vpow.pop %v643
  %v645 = vmul.f32 %v537, 1.442695
  %v646 = vpow.pop %v645
  %v647 = vmul.f32 %v538, 1.442695
  %v648 = vpow.pop %v647
  %v649 = vmul.f32 %v539, 1.442695
  %v650 = vpow.pop %v649
  %v651 = vmul.f32 %v540, 1.442695
  %v652 = vpow.pop %v651
  %v653 = vmul.f32 %v541, 1.442695
  %v654 = vpow.pop %v653
  %v655 = vmul.f32 %v542, 1.442695
  %v656 = vpow.pop %v655
  %v657 = vmul.f32 %v543, 1.442695
  %v658 = vpow.pop %v657
  %v659 = vmul.f32 %v544, 1.442695
  %v660 = vpow.pop %v659
  %v661 = vmul.f32 %v545, 1.442695
  %v662 = vpow.pop %v661
  %v663 = vmul.f32 %v546, 1.442695
  %v664 = vpow.pop %v663
  %v665 = vmul.f32 %v547, 1.442695
  %v666 = vpow.pop %v665
  %v667 = vmul.f32 %v548, 1.442695
  %v668 = vpow.pop %v667
  %v669 = vmul.f32 %v549, 1.442695
  %v670 = vpow.pop %v669
  %v671 = vmul.f32 %v550, 1.442695
  %v672 = vpow.pop %v671
  %v673 = vmul.f32 %v551, 1.442695
  %v674 = vpow.pop %v673
  %v675 = vmul.f32 %v552, 1.442695
  %v676 = vpow.pop %v675
  %v677 = vmul.f32 %v553, 1.442695
  %v678 = vpow.pop %v677
  %v679 = vmul.f32 %v554, 1.442695
  %v680 = vpow.pop %v679
  %v681 = vmul.f32 %v555, 1.442695
  %v682 = vpow.pop %v681
  %v683 = vmul.f32 %v556, 1.442695
  %v684 = vpow.pop %v683
  %v685 = vadd.f32 %v558, 1.0
  %v686 = vadd.f32 %v560, 1.0
  %v687 = vadd.f32 %v562, 1.0
  %v688 = vadd.f32 %v564, 1.0
  %v689 = vadd.f32 %v566, 1.0
  %v690 = vadd.f32 %v568, 1.0
  %v691 = vadd.f32 %v570, 1.0
  %v692 = vadd.f32 %v572, 1.0
  %v693 = vadd.f32 %v574, 1.0
  %v694 = vadd.f32 %v576, 1.0
  %v695 = vadd.f32 %v578, 1.0
  %v696 = vadd.f32 %v580, 1.0
  %v697 = vadd.f32 %v582, 1.0
  %v698 = vadd.f32 %v584, 1.0
  %v699 = vadd.f32 %v586, 1.0
  %v700 = vadd.f32 %v588, 1.0
  %v701 = vadd.f32 %v590, 1.0
  %v702 = vadd.f32 %v592, 1.0
  %v703 = vadd.f32 %v594, 1.0
  %v704 = vadd.f32 %v596, 1.0
  %v705 = vadd.f32 %v598, 1.0
  %v706 = vadd.f32 %v600, 1.0
  %v707 = vadd.f32 %v602, 1.0
  %v708 = vadd.f32 %v604, 1.0
  %v709 = vadd.f32 %v606, 1.0
  %v710 = vadd.f32 %v608, 1.0
  %v711 = vadd.f32 %v610, 1.0
  %v712 = vadd.f32 %v612, 1.0
  %v713 = vadd.f32 %v614, 1.0
  %v714 = vadd.f32 %v616, 1.0
  %v715 = vadd.f32 %v618, 1.0
  %v716 = vadd.f32 %v620, 1.0
  %v717 = vadd.f32 %v622, 1.0
  %v718 = vadd.f32 %v624, 1.0
  %v719 = vadd.f32 %v626, 1.0
  %v720 = vadd.f32 %v628, 1.0
  %v721 = vadd.f32 %v630, 1.0
  %v722 = vadd.f32 %v632, 1.0
  %v723 = vadd.f32 %v634, 1.0
  %v724 = vadd.f32 %v636, 1.0
  %v725 = vadd.f32 %v638, 1.0
  %v726 = vadd.f32 %v640, 1.0
  %v727 = vadd.f32 %v642, 1.0
  %v728 = vadd.f32 %v644, 1.0
  %v729 = vadd.f32 %v646, 1.0
  %v730 = vadd.f32 %v648, 1.0
  %v731 = vadd.f32 %v650, 1.0
  %v732 = vadd.f32 %v652, 1.0
  %v733 = vadd.f32 %v654, 1.0
  %v734 = vadd.f32 %v656, 1.0
  %v735 = vadd.f32 %v658, 1.0
  %v736 = vadd.f32 %v660, 1.0
  %v737 = vadd.f32 %v662, 1.0
  %v738 = vadd.f32 %v664, 1.0
  %v739 = vadd.f32 %v666, 1.0
  %v740 = vadd.f32 %v668, 1.0
  %v741 = vadd.f32 %v670, 1.0
  %v742 = vadd.f32 %v672, 1.0
  %v743 = vadd.f32 %v674, 1.0
  %v744 = vadd.f32 %v676, 1.0
  %v745 = vadd.f32 %v678, 1.0
  %v746 = vadd.f32 %v680, 1.0
  %v747 = vadd.f32 %v682, 1.0
  %v748 = vadd.f32 %v684, 1.0
  %v749 = vrcp.pop %v685
  %v750 = vmul.f32 %v685, %v749
  %v751 = vsub.f32 1.0, %v750
  %v752 = vmul.f32 %v749, %v751
  %v753 = vadd.f32 %v749, %v752
  %vm754 = vweird.f32 %v685
  %vm755 = vweird.f32 %v749
  %vm756 = vmor %vm754, %vm755
  %v757 = vsel %vm756, %v749, %v753
  %v758 = vand.u32 2147483647, %v685
  %vm759 = vcmp.eq.f32.partialorder %v758, 8.507059e+37
  %v760 = vand.u32 %v685, 2147483648
  %v761 = vor.u32 1.1754944e-38, %v760
  %v762 = vsel %vm759, %v761, %v757
  %v763 = vmul.f32 1.0, %v762
  %v764 = vrcp.pop %v686
  %v765 = vmul.f32 %v686, %v764
  %v766 = vsub.f32 1.0, %v765
  %v767 = vmul.f32 %v764, %v766
  %v768 = vadd.f32 %v764, %v767
  %vm769 = vweird.f32 %v686
  %vm770 = vweird.f32 %v764
  %vm771 = vmor %vm769, %vm770
  %v772 = vsel %vm771, %v764, %v768
  %v773 = vand.u32 2147483647, %v686
  %vm774 = vcmp.eq.f32.partialorder %v773, 8.507059e+37
  %v775 = vand.u32 %v686, 2147483648
  %v776 = vor.u32 1.1754944e-38, %v775
  %v777 = vsel %vm774, %v776, %v772
  %v778 = vmul.f32 1.0, %v777
  %v779 = vrcp.pop %v687
  %v780 = vmul.f32 %v687, %v779
  %v781 = vsub.f32 1.0, %v780
  %v782 = vmul.f32 %v779, %v781
  %v783 = vadd.f32 %v779, %v782
  %vm784 = vweird.f32 %v687
  %vm785 = vweird.f32 %v779
  %vm786 = vmor %vm784, %vm785
  %v787 = vsel %vm786, %v779, %v783
  %v788 = vand.u32 2147483647, %v687
  %vm789 = vcmp.eq.f32.partialorder %v788, 8.507059e+37
  %v790 = vand.u32 %v687, 2147483648
  %v791 = vor.u32 1.1754944e-38, %v790
  %v792 = vsel %vm789, %v791, %v787
  %v793 = vmul.f32 1.0, %v792
  %v794 = vrcp.pop %v688
  %v795 = vmul.f32 %v688, %v794
  %v796 = vsub.f32 1.0, %v795
  %v797 = vmul.f32 %v794, %v796
  %v798 = vadd.f32 %v794, %v797
  %vm799 = vweird.f32 %v688
  %vm800 = vweird.f32 %v794
  %vm801 = vmor %vm799, %vm800
  %v802 = vsel %vm801, %v794, %v798
  %v803 = vand.u32 2147483647, %v688
  %vm804 = vcmp.eq.f32.partialorder %v803, 8.507059e+37
  %v805 = vand.u32 %v688, 2147483648
  %v806 = vor.u32 1.1754944e-38, %v805
  %v807 = vsel %vm804, %v806, %v802
  %v808 = vmul.f32 1.0, %v807
  %v809 = vrcp.pop %v689
  %v810 = vmul.f32 %v689, %v809
  %v811 = vsub.f32 1.0, %v810
  %v812 = vmul.f32 %v809, %v811
  %v813 = vadd.f32 %v809, %v812
  %vm814 = vweird.f32 %v689
  %vm815 = vweird.f32 %v809
  %vm816 = vmor %vm814, %vm815
  %v817 = vsel %vm816, %v809, %v813
  %v818 = vand.u32 2147483647, %v689
  %vm819 = vcmp.eq.f32.partialorder %v818, 8.507059e+37
  %v820 = vand.u32 %v689, 2147483648
  %v821 = vor.u32 1.1754944e-38, %v820
  %v822 = vsel %vm819, %v821, %v817
  %v823 = vmul.f32 1.0, %v822
  %v824 = vrcp.pop %v690
  %v825 = vmul.f32 %v690, %v824
  %v826 = vsub.f32 1.0, %v825
  %v827 = vmul.f32 %v824, %v826
  %v828 = vadd.f32 %v824, %v827
  %vm829 = vweird.f32 %v690
  %vm830 = vweird.f32 %v824
  %vm831 = vmor %vm829, %vm830
  %v832 = vsel %vm831, %v824, %v828
  %v833 = vand.u32 2147483647, %v690
  %vm834 = vcmp.eq.f32.partialorder %v833, 8.507059e+37
  %v835 = vand.u32 %v690, 2147483648
  %v836 = vor.u32 1.1754944e-38, %v835
  %v837 = vsel %vm834, %v836, %v832
  %v838 = vmul.f32 1.0, %v837
  %v839 = vrcp.pop %v691
  %v840 = vmul.f32 %v691, %v839
  %v841 = vsub.f32 1.0, %v840
  %v842 = vmul.f32 %v839, %v841
  %v843 = vadd.f32 %v839, %v842
  %vm844 = vweird.f32 %v691
  %vm845 = vweird.f32 %v839
  %vm846 = vmor %vm844, %vm845
  %v847 = vsel %vm846, %v839, %v843
  %v848 = vand.u32 2147483647, %v691
  %vm849 = vcmp.eq.f32.partialorder %v848, 8.507059e+37
  %v850 = vand.u32 %v691, 2147483648
  %v851 = vor.u32 1.1754944e-38, %v850
  %v852 = vsel %vm849, %v851, %v847
  %v853 = vmul.f32 1.0, %v852
  %v854 = vrcp.pop %v692
  %v855 = vmul.f32 %v692, %v854
  %v856 = vsub.f32 1.0, %v855
  %v857 = vmul.f32 %v854, %v856
  %v858 = vadd.f32 %v854, %v857
  %vm859 = vweird.f32 %v692
  %vm860 = vweird.f32 %v854
  %vm861 = vmor %vm859, %vm860
  %v862 = vsel %vm861, %v854, %v858
  %v863 = vand.u32 2147483647, %v692
  %vm864 = vcmp.eq.f32.partialorder %v863, 8.507059e+37
  %v865 = vand.u32 %v692, 2147483648
  %v866 = vor.u32 1.1754944e-38, %v865
  %v867 = vsel %vm864, %v866, %v862
  %v868 = vmul.f32 1.0, %v867
  %v869 = vrcp.pop %v693
  %v870 = vmul.f32 %v693, %v869
  %v871 = vsub.f32 1.0, %v870
  %v872 = vmul.f32 %v869, %v871
  %v873 = vadd.f32 %v869, %v872
  %vm874 = vweird.f32 %v693
  %vm875 = vweird.f32 %v869
  %vm876 = vmor %vm874, %vm875
  %v877 = vsel %vm876, %v869, %v873
  %v878 = vand.u32 2147483647, %v693
  %vm879 = vcmp.eq.f32.partialorder %v878, 8.507059e+37
  %v880 = vand.u32 %v693, 2147483648
  %v881 = vor.u32 1.1754944e-38, %v880
  %v882 = vsel %vm879, %v881, %v877
  %v883 = vmul.f32 1.0, %v882
  %v884 = vrcp.pop %v694
  %v885 = vmul.f32 %v694, %v884
  %v886 = vsub.f32 1.0, %v885
  %v887 = vmul.f32 %v884, %v886
  %v888 = vadd.f32 %v884, %v887
  %vm889 = vweird.f32 %v694
  %vm890 = vweird.f32 %v884
  %vm891 = vmor %vm889, %vm890
  %v892 = vsel %vm891, %v884, %v888
  %v893 = vand.u32 2147483647, %v694
  %vm894 = vcmp.eq.f32.partialorder %v893, 8.507059e+37
  %v895 = vand.u32 %v694, 2147483648
  %v896 = vor.u32 1.1754944e-38, %v895
  %v897 = vsel %vm894, %v896, %v892
  %v898 = vmul.f32 1.0, %v897
  %v899 = vrcp.pop %v695
  %v900 = vmul.f32 %v695, %v899
  %v901 = vsub.f32 1.0, %v900
  %v902 = vmul.f32 %v899, %v901
  %v903 = vadd.f32 %v899, %v902
  %vm904 = vweird.f32 %v695
  %vm905 = vweird.f32 %v899
  %vm906 = vmor %vm904, %vm905
  %v907 = vsel %vm906, %v899, %v903
  %v908 = vand.u32 2147483647, %v695
  %vm909 = vcmp.eq.f32.partialorder %v908, 8.507059e+37
  %v910 = vand.u32 %v695, 2147483648
  %v911 = vor.u32 1.1754944e-38, %v910
  %v912 = vsel %vm909, %v911, %v907
  %v913 = vmul.f32 1.0, %v912
  %v914 = vrcp.pop %v696
  %v915 = vmul.f32 %v696, %v914
  %v916 = vsub.f32 1.0, %v915
  %v917 = vmul.f32 %v914, %v916
  %v918 = vadd.f32 %v914, %v917
  %vm919 = vweird.f32 %v696
  %vm920 = vweird.f32 %v914
  %vm921 = vmor %vm919, %vm920
  %v922 = vsel %vm921, %v914, %v918
  %v923 = vand.u32 2147483647, %v696
  %vm924 = vcmp.eq.f32.partialorder %v923, 8.507059e+37
  %v925 = vand.u32 %v696, 2147483648
  %v926 = vor.u32 1.1754944e-38, %v925
  %v927 = vsel %vm924, %v926, %v922
  %v928 = vmul.f32 1.0, %v927
  %v929 = vrcp.pop %v697
  %v930 = vmul.f32 %v697, %v929
  %v931 = vsub.f32 1.0, %v930
  %v932 = vmul.f32 %v929, %v931
  %v933 = vadd.f32 %v929, %v932
  %vm934 = vweird.f32 %v697
  %vm935 = vweird.f32 %v929
  %vm936 = vmor %vm934, %vm935
  %v937 = vsel %vm936, %v929, %v933
  %v938 = vand.u32 2147483647, %v697
  %vm939 = vcmp.eq.f32.partialorder %v938, 8.507059e+37
  %v940 = vand.u32 %v697, 2147483648
  %v941 = vor.u32 1.1754944e-38, %v940
  %v942 = vsel %vm939, %v941, %v937
  %v943 = vmul.f32 1.0, %v942
  %v944 = vrcp.pop %v698
  %v945 = vmul.f32 %v698, %v944
  %v946 = vsub.f32 1.0, %v945
  %v947 = vmul.f32 %v944, %v946
  %v948 = vadd.f32 %v944, %v947
  %vm949 = vweird.f32 %v698
  %vm950 = vweird.f32 %v944
  %vm951 = vmor %vm949, %vm950
  %v952 = vsel %vm951, %v944, %v948
  %v953 = vand.u32 2147483647, %v698
  %vm954 = vcmp.eq.f32.partialorder %v953, 8.507059e+37
  %v955 = vand.u32 %v698, 2147483648
  %v956 = vor.u32 1.1754944e-38, %v955
  %v957 = vsel %vm954, %v956, %v952
  %v958 = vmul.f32 1.0, %v957
  %v959 = vrcp.pop %v699
  %v960 = vmul.f32 %v699, %v959
  %v961 = vsub.f32 1.0, %v960
  %v962 = vmul.f32 %v959, %v961
  %v963 = vadd.f32 %v959, %v962
  %vm964 = vweird.f32 %v699
  %vm965 = vweird.f32 %v959
  %vm966 = vmor %vm964, %vm965
  %v967 = vsel %vm966, %v959, %v963
  %v968 = vand.u32 2147483647, %v699
  %vm969 = vcmp.eq.f32.partialorder %v968, 8.507059e+37
  %v970 = vand.u32 %v699, 2147483648
  %v971 = vor.u32 1.1754944e-38, %v970
  %v972 = vsel %vm969, %v971, %v967
  %v973 = vmul.f32 1.0, %v972
  %v974 = vrcp.pop %v700
  %v975 = vmul.f32 %v700, %v974
  %v976 = vsub.f32 1.0, %v975
  %v977 = vmul.f32 %v974, %v976
  %v978 = vadd.f32 %v974, %v977
  %vm979 = vweird.f32 %v700
  %vm980 = vweird.f32 %v974
  %vm981 = vmor %vm979, %vm980
  %v982 = vsel %vm981, %v974, %v978
  %v983 = vand.u32 2147483647, %v700
  %vm984 = vcmp.eq.f32.partialorder %v983, 8.507059e+37
  %v985 = vand.u32 %v700, 2147483648
  %v986 = vor.u32 1.1754944e-38, %v985
  %v987 = vsel %vm984, %v986, %v982
  %v988 = vmul.f32 1.0, %v987
  %v989 = vrcp.pop %v701
  %v990 = vmul.f32 %v701, %v989
  %v991 = vsub.f32 1.0, %v990
  %v992 = vmul.f32 %v989, %v991
  %v993 = vadd.f32 %v989, %v992
  %vm994 = vweird.f32 %v701
  %vm995 = vweird.f32 %v989
  %vm996 = vmor %vm994, %vm995
  %v997 = vsel %vm996, %v989, %v993
  %v998 = vand.u32 2147483647, %v701
  %vm999 = vcmp.eq.f32.partialorder %v998, 8.507059e+37
  %v1000 = vand.u32 %v701, 2147483648
  %v1001 = vor.u32 1.1754944e-38, %v1000
  %v1002 = vsel %vm999, %v1001, %v997
  %v1003 = vmul.f32 1.0, %v1002
  %v1004 = vrcp.pop %v702
  %v1005 = vmul.f32 %v702, %v1004
  %v1006 = vsub.f32 1.0, %v1005
  %v1007 = vmul.f32 %v1004, %v1006
  %v1008 = vadd.f32 %v1004, %v1007
  %vm1009 = vweird.f32 %v702
  %vm1010 = vweird.f32 %v1004
  %vm1011 = vmor %vm1009, %vm1010
  %v1012 = vsel %vm1011, %v1004, %v1008
  %v1013 = vand.u32 2147483647, %v702
  %vm1014 = vcmp.eq.f32.partialorder %v1013, 8.507059e+37
  %v1015 = vand.u32 %v702, 2147483648
  %v1016 = vor.u32 1.1754944e-38, %v1015
  %v1017 = vsel %vm1014, %v1016, %v1012
  %v1018 = vmul.f32 1.0, %v1017
  %v1019 = vrcp.pop %v703
  %v1020 = vmul.f32 %v703, %v1019
  %v1021 = vsub.f32 1.0, %v1020
  %v1022 = vmul.f32 %v1019, %v1021
  %v1023 = vadd.f32 %v1019, %v1022
  %vm1024 = vweird.f32 %v703
  %vm1025 = vweird.f32 %v1019
  %vm1026 = vmor %vm1024, %vm1025
  %v1027 = vsel %vm1026, %v1019, %v1023
  %v1028 = vand.u32 2147483647, %v703
  %vm1029 = vcmp.eq.f32.partialorder %v1028, 8.507059e+37
  %v1030 = vand.u32 %v703, 2147483648
  %v1031 = vor.u32 1.1754944e-38, %v1030
  %v1032 = vsel %vm1029, %v1031, %v1027
  %v1033 = vmul.f32 1.0, %v1032
  %v1034 = vrcp.pop %v704
  %v1035 = vmul.f32 %v704, %v1034
  %v1036 = vsub.f32 1.0, %v1035
  %v1037 = vmul.f32 %v1034, %v1036
  %v1038 = vadd.f32 %v1034, %v1037
  %vm1039 = vweird.f32 %v704
  %vm1040 = vweird.f32 %v1034
  %vm1041 = vmor %vm1039, %vm1040
  %v1042 = vsel %vm1041, %v1034, %v1038
  %v1043 = vand.u32 2147483647, %v704
  %vm1044 = vcmp.eq.f32.partialorder %v1043, 8.507059e+37
  %v1045 = vand.u32 %v704, 2147483648
  %v1046 = vor.u32 1.1754944e-38, %v1045
  %v1047 = vsel %vm1044, %v1046, %v1042
  %v1048 = vmul.f32 1.0, %v1047
  %v1049 = vrcp.pop %v705
  %v1050 = vmul.f32 %v705, %v1049
  %v1051 = vsub.f32 1.0, %v1050
  %v1052 = vmul.f32 %v1049, %v1051
  %v1053 = vadd.f32 %v1049, %v1052
  %vm1054 = vweird.f32 %v705
  %vm1055 = vweird.f32 %v1049
  %vm1056 = vmor %vm1054, %vm1055
  %v1057 = vsel %vm1056, %v1049, %v1053
  %v1058 = vand.u32 2147483647, %v705
  %vm1059 = vcmp.eq.f32.partialorder %v1058, 8.507059e+37
  %v1060 = vand.u32 %v705, 2147483648
  %v1061 = vor.u32 1.1754944e-38, %v1060
  %v1062 = vsel %vm1059, %v1061, %v1057
  %v1063 = vmul.f32 1.0, %v1062
  %v1064 = vrcp.pop %v706
  %v1065 = vmul.f32 %v706, %v1064
  %v1066 = vsub.f32 1.0, %v1065
  %v1067 = vmul.f32 %v1064, %v1066
  %v1068 = vadd.f32 %v1064, %v1067
  %vm1069 = vweird.f32 %v706
  %vm1070 = vweird.f32 %v1064
  %vm1071 = vmor %vm1069, %vm1070
  %v1072 = vsel %vm1071, %v1064, %v1068
  %v1073 = vand.u32 2147483647, %v706
  %vm1074 = vcmp.eq.f32.partialorder %v1073, 8.507059e+37
  %v1075 = vand.u32 %v706, 2147483648
  %v1076 = vor.u32 1.1754944e-38, %v1075
  %v1077 = vsel %vm1074, %v1076, %v1072
  %v1078 = vmul.f32 1.0, %v1077
  %v1079 = vrcp.pop %v707
  %v1080 = vmul.f32 %v707, %v1079
  %v1081 = vsub.f32 1.0, %v1080
  %v1082 = vmul.f32 %v1079, %v1081
  %v1083 = vadd.f32 %v1079, %v1082
  %vm1084 = vweird.f32 %v707
  %vm1085 = vweird.f32 %v1079
  %vm1086 = vmor %vm1084, %vm1085
  %v1087 = vsel %vm1086, %v1079, %v1083
  %v1088 = vand.u32 2147483647, %v707
  %vm1089 = vcmp.eq.f32.partialorder %v1088, 8.507059e+37
  %v1090 = vand.u32 %v707, 2147483648
  %v1091 = vor.u32 1.1754944e-38, %v1090
  %v1092 = vsel %vm1089, %v1091, %v1087
  %v1093 = vmul.f32 1.0, %v1092
  %v1094 = vrcp.pop %v708
  %v1095 = vmul.f32 %v708, %v1094
  %v1096 = vsub.f32 1.0, %v1095
  %v1097 = vmul.f32 %v1094, %v1096
  %v1098 = vadd.f32 %v1094, %v1097
  %vm1099 = vweird.f32 %v708
  %vm1100 = vweird.f32 %v1094
  %vm1101 = vmor %vm1099, %vm1100
  %v1102 = vsel %vm1101, %v1094, %v1098
  %v1103 = vand.u32 2147483647, %v708
  %vm1104 = vcmp.eq.f32.partialorder %v1103, 8.507059e+37
  %v1105 = vand.u32 %v708, 2147483648
  %v1106 = vor.u32 1.1754944e-38, %v1105
  %v1107 = vsel %vm1104, %v1106, %v1102
  %v1108 = vmul.f32 1.0, %v1107
  %v1109 = vrcp.pop %v709
  %v1110 = vmul.f32 %v709, %v1109
  %v1111 = vsub.f32 1.0, %v1110
  %v1112 = vmul.f32 %v1109, %v1111
  %v1113 = vadd.f32 %v1109, %v1112
  %vm1114 = vweird.f32 %v709
  %vm1115 = vweird.f32 %v1109
  %vm1116 = vmor %vm1114, %vm1115
  %v1117 = vsel %vm1116, %v1109, %v1113
  %v1118 = vand.u32 2147483647, %v709
  %vm1119 = vcmp.eq.f32.partialorder %v1118, 8.507059e+37
  %v1120 = vand.u32 %v709, 2147483648
  %v1121 = vor.u32 1.1754944e-38, %v1120
  %v1122 = vsel %vm1119, %v1121, %v1117
  %v1123 = vmul.f32 1.0, %v1122
  %v1124 = vrcp.pop %v710
  %v1125 = vmul.f32 %v710, %v1124
  %v1126 = vsub.f32 1.0, %v1125
  %v1127 = vmul.f32 %v1124, %v1126
  %v1128 = vadd.f32 %v1124, %v1127
  %vm1129 = vweird.f32 %v710
  %vm1130 = vweird.f32 %v1124
  %vm1131 = vmor %vm1129, %vm1130
  %v1132 = vsel %vm1131, %v1124, %v1128
  %v1133 = vand.u32 2147483647, %v710
  %vm1134 = vcmp.eq.f32.partialorder %v1133, 8.507059e+37
  %v1135 = vand.u32 %v710, 2147483648
  %v1136 = vor.u32 1.1754944e-38, %v1135
  %v1137 = vsel %vm1134, %v1136, %v1132
  %v1138 = vmul.f32 1.0, %v1137
  %v1139 = vrcp.pop %v711
  %v1140 = vmul.f32 %v711, %v1139
  %v1141 = vsub.f32 1.0, %v1140
  %v1142 = vmul.f32 %v1139, %v1141
  %v1143 = vadd.f32 %v1139, %v1142
  %vm1144 = vweird.f32 %v711
  %vm1145 = vweird.f32 %v1139
  %vm1146 = vmor %vm1144, %vm1145
  %v1147 = vsel %vm1146, %v1139, %v1143
  %v1148 = vand.u32 2147483647, %v711
  %vm1149 = vcmp.eq.f32.partialorder %v1148, 8.507059e+37
  %v1150 = vand.u32 %v711, 2147483648
  %v1151 = vor.u32 1.1754944e-38, %v1150
  %v1152 = vsel %vm1149, %v1151, %v1147
  %v1153 = vmul.f32 1.0, %v1152
  %v1154 = vrcp.pop %v712
  %v1155 = vmul.f32 %v712, %v1154
  %v1156 = vsub.f32 1.0, %v1155
  %v1157 = vmul.f32 %v1154, %v1156
  %v1158 = vadd.f32 %v1154, %v1157
  %vm1159 = vweird.f32 %v712
  %vm1160 = vweird.f32 %v1154
  %vm1161 = vmor %vm1159, %vm1160
  %v1162 = vsel %vm1161, %v1154, %v1158
  %v1163 = vand.u32 2147483647, %v712
  %vm1164 = vcmp.eq.f32.partialorder %v1163, 8.507059e+37
  %v1165 = vand.u32 %v712, 2147483648
  %v1166 = vor.u32 1.1754944e-38, %v1165
  %v1167 = vsel %vm1164, %v1166, %v1162
  %v1168 = vmul.f32 1.0, %v1167
  %v1169 = vrcp.pop %v713
  %v1170 = vmul.f32 %v713, %v1169
  %v1171 = vsub.f32 1.0, %v1170
  %v1172 = vmul.f32 %v1169, %v1171
  %v1173 = vadd.f32 %v1169, %v1172
  %vm1174 = vweird.f32 %v713
  %vm1175 = vweird.f32 %v1169
  %vm1176 = vmor %vm1174, %vm1175
  %v1177 = vsel %vm1176, %v1169, %v1173
  %v1178 = vand.u32 2147483647, %v713
  %vm1179 = vcmp.eq.f32.partialorder %v1178, 8.507059e+37
  %v1180 = vand.u32 %v713, 2147483648
  %v1181 = vor.u32 1.1754944e-38, %v1180
  %v1182 = vsel %vm1179, %v1181, %v1177
  %v1183 = vmul.f32 1.0, %v1182
  %v1184 = vrcp.pop %v714
  %v1185 = vmul.f32 %v714, %v1184
  %v1186 = vsub.f32 1.0, %v1185
  %v1187 = vmul.f32 %v1184, %v1186
  %v1188 = vadd.f32 %v1184, %v1187
  %vm1189 = vweird.f32 %v714
  %vm1190 = vweird.f32 %v1184
  %vm1191 = vmor %vm1189, %vm1190
  %v1192 = vsel %vm1191, %v1184, %v1188
  %v1193 = vand.u32 2147483647, %v714
  %vm1194 = vcmp.eq.f32.partialorder %v1193, 8.507059e+37
  %v1195 = vand.u32 %v714, 2147483648
  %v1196 = vor.u32 1.1754944e-38, %v1195
  %v1197 = vsel %vm1194, %v1196, %v1192
  %v1198 = vmul.f32 1.0, %v1197
  %v1199 = vrcp.pop %v715
  %v1200 = vmul.f32 %v715, %v1199
  %v1201 = vsub.f32 1.0, %v1200
  %v1202 = vmul.f32 %v1199, %v1201
  %v1203 = vadd.f32 %v1199, %v1202
  %vm1204 = vweird.f32 %v715
  %vm1205 = vweird.f32 %v1199
  %vm1206 = vmor %vm1204, %vm1205
  %v1207 = vsel %vm1206, %v1199, %v1203
  %v1208 = vand.u32 2147483647, %v715
  %vm1209 = vcmp.eq.f32.partialorder %v1208, 8.507059e+37
  %v1210 = vand.u32 %v715, 2147483648
  %v1211 = vor.u32 1.1754944e-38, %v1210
  %v1212 = vsel %vm1209, %v1211, %v1207
  %v1213 = vmul.f32 1.0, %v1212
  %v1214 = vrcp.pop %v716
  %v1215 = vmul.f32 %v716, %v1214
  %v1216 = vsub.f32 1.0, %v1215
  %v1217 = vmul.f32 %v1214, %v1216
  %v1218 = vadd.f32 %v1214, %v1217
  %vm1219 = vweird.f32 %v716
  %vm1220 = vweird.f32 %v1214
  %vm1221 = vmor %vm1219, %vm1220
  %v1222 = vsel %vm1221, %v1214, %v1218
  %v1223 = vand.u32 2147483647, %v716
  %vm1224 = vcmp.eq.f32.partialorder %v1223, 8.507059e+37
  %v1225 = vand.u32 %v716, 2147483648
  %v1226 = vor.u32 1.1754944e-38, %v1225
  %v1227 = vsel %vm1224, %v1226, %v1222
  %v1228 = vmul.f32 1.0, %v1227
  %v1229 = vrcp.pop %v717
  %v1230 = vmul.f32 %v717, %v1229
  %v1231 = vsub.f32 1.0, %v1230
  %v1232 = vmul.f32 %v1229, %v1231
  %v1233 = vadd.f32 %v1229, %v1232
  %vm1234 = vweird.f32 %v717
  %vm1235 = vweird.f32 %v1229
  %vm1236 = vmor %vm1234, %vm1235
  %v1237 = vsel %vm1236, %v1229, %v1233
  %v1238 = vand.u32 2147483647, %v717
  %vm1239 = vcmp.eq.f32.partialorder %v1238, 8.507059e+37
  %v1240 = vand.u32 %v717, 2147483648
  %v1241 = vor.u32 1.1754944e-38, %v1240
  %v1242 = vsel %vm1239, %v1241, %v1237
  %v1243 = vmul.f32 1.0, %v1242
  %v1244 = vrcp.pop %v718
  %v1245 = vmul.f32 %v718, %v1244
  %v1246 = vsub.f32 1.0, %v1245
  %v1247 = vmul.f32 %v1244, %v1246
  %v1248 = vadd.f32 %v1244, %v1247
  %vm1249 = vweird.f32 %v718
  %vm1250 = vweird.f32 %v1244
  %vm1251 = vmor %vm1249, %vm1250
  %v1252 = vsel %vm1251, %v1244, %v1248
  %v1253 = vand.u32 2147483647, %v718
  %vm1254 = vcmp.eq.f32.partialorder %v1253, 8.507059e+37
  %v1255 = vand.u32 %v718, 2147483648
  %v1256 = vor.u32 1.1754944e-38, %v1255
  %v1257 = vsel %vm1254, %v1256, %v1252
  %v1258 = vmul.f32 1.0, %v1257
  %v1259 = vrcp.pop %v719
  %v1260 = vmul.f32 %v719, %v1259
  %v1261 = vsub.f32 1.0, %v1260
  %v1262 = vmul.f32 %v1259, %v1261
  %v1263 = vadd.f32 %v1259, %v1262
  %vm1264 = vweird.f32 %v719
  %vm1265 = vweird.f32 %v1259
  %vm1266 = vmor %vm1264, %vm1265
  %v1267 = vsel %vm1266, %v1259, %v1263
  %v1268 = vand.u32 2147483647, %v719
  %vm1269 = vcmp.eq.f32.partialorder %v1268, 8.507059e+37
  %v1270 = vand.u32 %v719, 2147483648
  %v1271 = vor.u32 1.1754944e-38, %v1270
  %v1272 = vsel %vm1269, %v1271, %v1267
  %v1273 = vmul.f32 1.0, %v1272
  %v1274 = vrcp.pop %v720
  %v1275 = vmul.f32 %v720, %v1274
  %v1276 = vsub.f32 1.0, %v1275
  %v1277 = vmul.f32 %v1274, %v1276
  %v1278 = vadd.f32 %v1274, %v1277
  %vm1279 = vweird.f32 %v720
  %vm1280 = vweird.f32 %v1274
  %vm1281 = vmor %vm1279, %vm1280
  %v1282 = vsel %vm1281, %v1274, %v1278
  %v1283 = vand.u32 2147483647, %v720
  %vm1284 = vcmp.eq.f32.partialorder %v1283, 8.507059e+37
  %v1285 = vand.u32 %v720, 2147483648
  %v1286 = vor.u32 1.1754944e-38, %v1285
  %v1287 = vsel %vm1284, %v1286, %v1282
  %v1288 = vmul.f32 1.0, %v1287
  %v1289 = vrcp.pop %v721
  %v1290 = vmul.f32 %v721, %v1289
  %v1291 = vsub.f32 1.0, %v1290
  %v1292 = vmul.f32 %v1289, %v1291
  %v1293 = vadd.f32 %v1289, %v1292
  %vm1294 = vweird.f32 %v721
  %vm1295 = vweird.f32 %v1289
  %vm1296 = vmor %vm1294, %vm1295
  %v1297 = vsel %vm1296, %v1289, %v1293
  %v1298 = vand.u32 2147483647, %v721
  %vm1299 = vcmp.eq.f32.partialorder %v1298, 8.507059e+37
  %v1300 = vand.u32 %v721, 2147483648
  %v1301 = vor.u32 1.1754944e-38, %v1300
  %v1302 = vsel %vm1299, %v1301, %v1297
  %v1303 = vmul.f32 1.0, %v1302
  %v1304 = vrcp.pop %v722
  %v1305 = vmul.f32 %v722, %v1304
  %v1306 = vsub.f32 1.0, %v1305
  %v1307 = vmul.f32 %v1304, %v1306
  %v1308 = vadd.f32 %v1304, %v1307
  %vm1309 = vweird.f32 %v722
  %vm1310 = vweird.f32 %v1304
  %vm1311 = vmor %vm1309, %vm1310
  %v1312 = vsel %vm1311, %v1304, %v1308
  %v1313 = vand.u32 2147483647, %v722
  %vm1314 = vcmp.eq.f32.partialorder %v1313, 8.507059e+37
  %v1315 = vand.u32 %v722, 2147483648
  %v1316 = vor.u32 1.1754944e-38, %v1315
  %v1317 = vsel %vm1314, %v1316, %v1312
  %v1318 = vmul.f32 1.0, %v1317
  %v1319 = vrcp.pop %v723
  %v1320 = vmul.f32 %v723, %v1319
  %v1321 = vsub.f32 1.0, %v1320
  %v1322 = vmul.f32 %v1319, %v1321
  %v1323 = vadd.f32 %v1319, %v1322
  %vm1324 = vweird.f32 %v723
  %vm1325 = vweird.f32 %v1319
  %vm1326 = vmor %vm1324, %vm1325
  %v1327 = vsel %vm1326, %v1319, %v1323
  %v1328 = vand.u32 2147483647, %v723
  %vm1329 = vcmp.eq.f32.partialorder %v1328, 8.507059e+37
  %v1330 = vand.u32 %v723, 2147483648
  %v1331 = vor.u32 1.1754944e-38, %v1330
  %v1332 = vsel %vm1329, %v1331, %v1327
  %v1333 = vmul.f32 1.0, %v1332
  %v1334 = vrcp.pop %v724
  %v1335 = vmul.f32 %v724, %v1334
  %v1336 = vsub.f32 1.0, %v1335
  %v1337 = vmul.f32 %v1334, %v1336
  %v1338 = vadd.f32 %v1334, %v1337
  %vm1339 = vweird.f32 %v724
  %vm1340 = vweird.f32 %v1334
  %vm1341 = vmor %vm1339, %vm1340
  %v1342 = vsel %vm1341, %v1334, %v1338
  %v1343 = vand.u32 2147483647, %v724
  %vm1344 = vcmp.eq.f32.partialorder %v1343, 8.507059e+37
  %v1345 = vand.u32 %v724, 2147483648
  %v1346 = vor.u32 1.1754944e-38, %v1345
  %v1347 = vsel %vm1344, %v1346, %v1342
  %v1348 = vmul.f32 1.0, %v1347
  %v1349 = vrcp.pop %v725
  %v1350 = vmul.f32 %v725, %v1349
  %v1351 = vsub.f32 1.0, %v1350
  %v1352 = vmul.f32 %v1349, %v1351
  %v1353 = vadd.f32 %v1349, %v1352
  %vm1354 = vweird.f32 %v725
  %vm1355 = vweird.f32 %v1349
  %vm1356 = vmor %vm1354, %vm1355
  %v1357 = vsel %vm1356, %v1349, %v1353
  %v1358 = vand.u32 2147483647, %v725
  %vm1359 = vcmp.eq.f32.partialorder %v1358, 8.507059e+37
  %v1360 = vand.u32 %v725, 2147483648
  %v1361 = vor.u32 1.1754944e-38, %v1360
  %v1362 = vsel %vm1359, %v1361, %v1357
  %v1363 = vmul.f32 1.0, %v1362
  %v1364 = vrcp.pop %v726
  %v1365 = vmul.f32 %v726, %v1364
  %v1366 = vsub.f32 1.0, %v1365
  %v1367 = vmul.f32 %v1364, %v1366
  %v1368 = vadd.f32 %v1364, %v1367
  %vm1369 = vweird.f32 %v726
  %vm1370 = vweird.f32 %v1364
  %vm1371 = vmor %vm1369, %vm1370
  %v1372 = vsel %vm1371, %v1364, %v1368
  %v1373 = vand.u32 2147483647, %v726
  %vm1374 = vcmp.eq.f32.partialorder %v1373, 8.507059e+37
  %v1375 = vand.u32 %v726, 2147483648
  %v1376 = vor.u32 1.1754944e-38, %v1375
  %v1377 = vsel %vm1374, %v1376, %v1372
  %v1378 = vmul.f32 1.0, %v1377
  %v1379 = vrcp.pop %v727
  %v1380 = vmul.f32 %v727, %v1379
  %v1381 = vsub.f32 1.0, %v1380
  %v1382 = vmul.f32 %v1379, %v1381
  %v1383 = vadd.f32 %v1379, %v1382
  %vm1384 = vweird.f32 %v727
  %vm1385 = vweird.f32 %v1379
  %vm1386 = vmor %vm1384, %vm1385
  %v1387 = vsel %vm1386, %v1379, %v1383
  %v1388 = vand.u32 2147483647, %v727
  %vm1389 = vcmp.eq.f32.partialorder %v1388, 8.507059e+37
  %v1390 = vand.u32 %v727, 2147483648
  %v1391 = vor.u32 1.1754944e-38, %v1390
  %v1392 = vsel %vm1389, %v1391, %v1387
  %v1393 = vmul.f32 1.0, %v1392
  %v1394 = vrcp.pop %v728
  %v1395 = vmul.f32 %v728, %v1394
  %v1396 = vsub.f32 1.0, %v1395
  %v1397 = vmul.f32 %v1394, %v1396
  %v1398 = vadd.f32 %v1394, %v1397
  %vm1399 = vweird.f32 %v728
  %vm1400 = vweird.f32 %v1394
  %vm1401 = vmor %vm1399, %vm1400
  %v1402 = vsel %vm1401, %v1394, %v1398
  %v1403 = vand.u32 2147483647, %v728
  %vm1404 = vcmp.eq.f32.partialorder %v1403, 8.507059e+37
  %v1405 = vand.u32 %v728, 2147483648
  %v1406 = vor.u32 1.1754944e-38, %v1405
  %v1407 = vsel %vm1404, %v1406, %v1402
  %v1408 = vmul.f32 1.0, %v1407
  %v1409 = vrcp.pop %v729
  %v1410 = vmul.f32 %v729, %v1409
  %v1411 = vsub.f32 1.0, %v1410
  %v1412 = vmul.f32 %v1409, %v1411
  %v1413 = vadd.f32 %v1409, %v1412
  %vm1414 = vweird.f32 %v729
  %vm1415 = vweird.f32 %v1409
  %vm1416 = vmor %vm1414, %vm1415
  %v1417 = vsel %vm1416, %v1409, %v1413
  %v1418 = vand.u32 2147483647, %v729
  %vm1419 = vcmp.eq.f32.partialorder %v1418, 8.507059e+37
  %v1420 = vand.u32 %v729, 2147483648
  %v1421 = vor.u32 1.1754944e-38, %v1420
  %v1422 = vsel %vm1419, %v1421, %v1417
  %v1423 = vmul.f32 1.0, %v1422
  %v1424 = vrcp.pop %v730
  %v1425 = vmul.f32 %v730, %v1424
  %v1426 = vsub.f32 1.0, %v1425
  %v1427 = vmul.f32 %v1424, %v1426
  %v1428 = vadd.f32 %v1424, %v1427
  %vm1429 = vweird.f32 %v730
  %vm1430 = vweird.f32 %v1424
  %vm1431 = vmor %vm1429, %vm1430
  %v1432 = vsel %vm1431, %v1424, %v1428
  %v1433 = vand.u32 2147483647, %v730
  %vm1434 = vcmp.eq.f32.partialorder %v1433, 8.507059e+37
  %v1435 = vand.u32 %v730, 2147483648
  %v1436 = vor.u32 1.1754944e-38, %v1435
  %v1437 = vsel %vm1434, %v1436, %v1432
  %v1438 = vmul.f32 1.0, %v1437
  %v1439 = vrcp.pop %v731
  %v1440 = vmul.f32 %v731, %v1439
  %v1441 = vsub.f32 1.0, %v1440
  %v1442 = vmul.f32 %v1439, %v1441
  %v1443 = vadd.f32 %v1439, %v1442
  %vm1444 = vweird.f32 %v731
  %vm1445 = vweird.f32 %v1439
  %vm1446 = vmor %vm1444, %vm1445
  %v1447 = vsel %vm1446, %v1439, %v1443
  %v1448 = vand.u32 2147483647, %v731
  %vm1449 = vcmp.eq.f32.partialorder %v1448, 8.507059e+37
  %v1450 = vand.u32 %v731, 2147483648
  %v1451 = vor.u32 1.1754944e-38, %v1450
  %v1452 = vsel %vm1449, %v1451, %v1447
  %v1453 = vmul.f32 1.0, %v1452
  %v1454 = vrcp.pop %v732
  %v1455 = vmul.f32 %v732, %v1454
  %v1456 = vsub.f32 1.0, %v1455
  %v1457 = vmul.f32 %v1454, %v1456
  %v1458 = vadd.f32 %v1454, %v1457
  %vm1459 = vweird.f32 %v732
  %vm1460 = vweird.f32 %v1454
  %vm1461 = vmor %vm1459, %vm1460
  %v1462 = vsel %vm1461, %v1454, %v1458
  %v1463 = vand.u32 2147483647, %v732
  %vm1464 = vcmp.eq.f32.partialorder %v1463, 8.507059e+37
  %v1465 = vand.u32 %v732, 2147483648
  %v1466 = vor.u32 1.1754944e-38, %v1465
  %v1467 = vsel %vm1464, %v1466, %v1462
  %v1468 = vmul.f32 1.0, %v1467
  %v1469 = vrcp.pop %v733
  %v1470 = vmul.f32 %v733, %v1469
  %v1471 = vsub.f32 1.0, %v1470
  %v1472 = vmul.f32 %v1469, %v1471
  %v1473 = vadd.f32 %v1469, %v1472
  %vm1474 = vweird.f32 %v733
  %vm1475 = vweird.f32 %v1469
  %vm1476 = vmor %vm1474, %vm1475
  %v1477 = vsel %vm1476, %v1469, %v1473
  %v1478 = vand.u32 2147483647, %v733
  %vm1479 = vcmp.eq.f32.partialorder %v1478, 8.507059e+37
  %v1480 = vand.u32 %v733, 2147483648
  %v1481 = vor.u32 1.1754944e-38, %v1480
  %v1482 = vsel %vm1479, %v1481, %v1477
  %v1483 = vmul.f32 1.0, %v1482
  %v1484 = vrcp.pop %v734
  %v1485 = vmul.f32 %v734, %v1484
  %v1486 = vsub.f32 1.0, %v1485
  %v1487 = vmul.f32 %v1484, %v1486
  %v1488 = vadd.f32 %v1484, %v1487
  %vm1489 = vweird.f32 %v734
  %vm1490 = vweird.f32 %v1484
  %vm1491 = vmor %vm1489, %vm1490
  %v1492 = vsel %vm1491, %v1484, %v1488
  %v1493 = vand.u32 2147483647, %v734
  %vm1494 = vcmp.eq.f32.partialorder %v1493, 8.507059e+37
  %v1495 = vand.u32 %v734, 2147483648
  %v1496 = vor.u32 1.1754944e-38, %v1495
  %v1497 = vsel %vm1494, %v1496, %v1492
  %v1498 = vmul.f32 1.0, %v1497
  %v1499 = vrcp.pop %v735
  %v1500 = vmul.f32 %v735, %v1499
  %v1501 = vsub.f32 1.0, %v1500
  %v1502 = vmul.f32 %v1499, %v1501
  %v1503 = vadd.f32 %v1499, %v1502
  %vm1504 = vweird.f32 %v735
  %vm1505 = vweird.f32 %v1499
  %vm1506 = vmor %vm1504, %vm1505
  %v1507 = vsel %vm1506, %v1499, %v1503
  %v1508 = vand.u32 2147483647, %v735
  %vm1509 = vcmp.eq.f32.partialorder %v1508, 8.507059e+37
  %v1510 = vand.u32 %v735, 2147483648
  %v1511 = vor.u32 1.1754944e-38, %v1510
  %v1512 = vsel %vm1509, %v1511, %v1507
  %v1513 = vmul.f32 1.0, %v1512
  %v1514 = vrcp.pop %v736
  %v1515 = vmul.f32 %v736, %v1514
  %v1516 = vsub.f32 1.0, %v1515
  %v1517 = vmul.f32 %v1514, %v1516
  %v1518 = vadd.f32 %v1514, %v1517
  %vm1519 = vweird.f32 %v736
  %vm1520 = vweird.f32 %v1514
  %vm1521 = vmor %vm1519, %vm1520
  %v1522 = vsel %vm1521, %v1514, %v1518
  %v1523 = vand.u32 2147483647, %v736
  %vm1524 = vcmp.eq.f32.partialorder %v1523, 8.507059e+37
  %v1525 = vand.u32 %v736, 2147483648
  %v1526 = vor.u32 1.1754944e-38, %v1525
  %v1527 = vsel %vm1524, %v1526, %v1522
  %v1528 = vmul.f32 1.0, %v1527
  %v1529 = vrcp.pop %v737
  %v1530 = vmul.f32 %v737, %v1529
  %v1531 = vsub.f32 1.0, %v1530
  %v1532 = vmul.f32 %v1529, %v1531
  %v1533 = vadd.f32 %v1529, %v1532
  %vm1534 = vweird.f32 %v737
  %vm1535 = vweird.f32 %v1529
  %vm1536 = vmor %vm1534, %vm1535
  %v1537 = vsel %vm1536, %v1529, %v1533
  %v1538 = vand.u32 2147483647, %v737
  %vm1539 = vcmp.eq.f32.partialorder %v1538, 8.507059e+37
  %v1540 = vand.u32 %v737, 2147483648
  %v1541 = vor.u32 1.1754944e-38, %v1540
  %v1542 = vsel %vm1539, %v1541, %v1537
  %v1543 = vmul.f32 1.0, %v1542
  %v1544 = vrcp.pop %v738
  %v1545 = vmul.f32 %v738, %v1544
  %v1546 = vsub.f32 1.0, %v1545
  %v1547 = vmul.f32 %v1544, %v1546
  %v1548 = vadd.f32 %v1544, %v1547
  %vm1549 = vweird.f32 %v738
  %vm1550 = vweird.f32 %v1544
  %vm1551 = vmor %vm1549, %vm1550
  %v1552 = vsel %vm1551, %v1544, %v1548
  %v1553 = vand.u32 2147483647, %v738
  %vm1554 = vcmp.eq.f32.partialorder %v1553, 8.507059e+37
  %v1555 = vand.u32 %v738, 2147483648
  %v1556 = vor.u32 1.1754944e-38, %v1555
  %v1557 = vsel %vm1554, %v1556, %v1552
  %v1558 = vmul.f32 1.0, %v1557
  %v1559 = vrcp.pop %v739
  %v1560 = vmul.f32 %v739, %v1559
  %v1561 = vsub.f32 1.0, %v1560
  %v1562 = vmul.f32 %v1559, %v1561
  %v1563 = vadd.f32 %v1559, %v1562
  %vm1564 = vweird.f32 %v739
  %vm1565 = vweird.f32 %v1559
  %vm1566 = vmor %vm1564, %vm1565
  %v1567 = vsel %vm1566, %v1559, %v1563
  %v1568 = vand.u32 2147483647, %v739
  %vm1569 = vcmp.eq.f32.partialorder %v1568, 8.507059e+37
  %v1570 = vand.u32 %v739, 2147483648
  %v1571 = vor.u32 1.1754944e-38, %v1570
  %v1572 = vsel %vm1569, %v1571, %v1567
  %v1573 = vmul.f32 1.0, %v1572
  %v1574 = vrcp.pop %v740
  %v1575 = vmul.f32 %v740, %v1574
  %v1576 = vsub.f32 1.0, %v1575
  %v1577 = vmul.f32 %v1574, %v1576
  %v1578 = vadd.f32 %v1574, %v1577
  %vm1579 = vweird.f32 %v740
  %vm1580 = vweird.f32 %v1574
  %vm1581 = vmor %vm1579, %vm1580
  %v1582 = vsel %vm1581, %v1574, %v1578
  %v1583 = vand.u32 2147483647, %v740
  %vm1584 = vcmp.eq.f32.partialorder %v1583, 8.507059e+37
  %v1585 = vand.u32 %v740, 2147483648
  %v1586 = vor.u32 1.1754944e-38, %v1585
  %v1587 = vsel %vm1584, %v1586, %v1582
  %v1588 = vmul.f32 1.0, %v1587
  %v1589 = vrcp.pop %v741
  %v1590 = vmul.f32 %v741, %v1589
  %v1591 = vsub.f32 1.0, %v1590
  %v1592 = vmul.f32 %v1589, %v1591
  %v1593 = vadd.f32 %v1589, %v1592
  %vm1594 = vweird.f32 %v741
  %vm1595 = vweird.f32 %v1589
  %vm1596 = vmor %vm1594, %vm1595
  %v1597 = vsel %vm1596, %v1589, %v1593
  %v1598 = vand.u32 2147483647, %v741
  %vm1599 = vcmp.eq.f32.partialorder %v1598, 8.507059e+37
  %v1600 = vand.u32 %v741, 2147483648
  %v1601 = vor.u32 1.1754944e-38, %v1600
  %v1602 = vsel %vm1599, %v1601, %v1597
  %v1603 = vmul.f32 1.0, %v1602
  %v1604 = vrcp.pop %v742
  %v1605 = vmul.f32 %v742, %v1604
  %v1606 = vsub.f32 1.0, %v1605
  %v1607 = vmul.f32 %v1604, %v1606
  %v1608 = vadd.f32 %v1604, %v1607
  %vm1609 = vweird.f32 %v742
  %vm1610 = vweird.f32 %v1604
  %vm1611 = vmor %vm1609, %vm1610
  %v1612 = vsel %vm1611, %v1604, %v1608
  %v1613 = vand.u32 2147483647, %v742
  %vm1614 = vcmp.eq.f32.partialorder %v1613, 8.507059e+37
  %v1615 = vand.u32 %v742, 2147483648
  %v1616 = vor.u32 1.1754944e-38, %v1615
  %v1617 = vsel %vm1614, %v1616, %v1612
  %v1618 = vmul.f32 1.0, %v1617
  %v1619 = vrcp.pop %v743
  %v1620 = vmul.f32 %v743, %v1619
  %v1621 = vsub.f32 1.0, %v1620
  %v1622 = vmul.f32 %v1619, %v1621
  %v1623 = vadd.f32 %v1619, %v1622
  %vm1624 = vweird.f32 %v743
  %vm1625 = vweird.f32 %v1619
  %vm1626 = vmor %vm1624, %vm1625
  %v1627 = vsel %vm1626, %v1619, %v1623
  %v1628 = vand.u32 2147483647, %v743
  %vm1629 = vcmp.eq.f32.partialorder %v1628, 8.507059e+37
  %v1630 = vand.u32 %v743, 2147483648
  %v1631 = vor.u32 1.1754944e-38, %v1630
  %v1632 = vsel %vm1629, %v1631, %v1627
  %v1633 = vmul.f32 1.0, %v1632
  %v1634 = vrcp.pop %v744
  %v1635 = vmul.f32 %v744, %v1634
  %v1636 = vsub.f32 1.0, %v1635
  %v1637 = vmul.f32 %v1634, %v1636
  %v1638 = vadd.f32 %v1634, %v1637
  %vm1639 = vweird.f32 %v744
  %vm1640 = vweird.f32 %v1634
  %vm1641 = vmor %vm1639, %vm1640
  %v1642 = vsel %vm1641, %v1634, %v1638
  %v1643 = vand.u32 2147483647, %v744
  %vm1644 = vcmp.eq.f32.partialorder %v1643, 8.507059e+37
  %v1645 = vand.u32 %v744, 2147483648
  %v1646 = vor.u32 1.1754944e-38, %v1645
  %v1647 = vsel %vm1644, %v1646, %v1642
  %v1648 = vmul.f32 1.0, %v1647
  %v1649 = vrcp.pop %v745
  %v1650 = vmul.f32 %v745, %v1649
  %v1651 = vsub.f32 1.0, %v1650
  %v1652 = vmul.f32 %v1649, %v1651
  %v1653 = vadd.f32 %v1649, %v1652
  %vm1654 = vweird.f32 %v745
  %vm1655 = vweird.f32 %v1649
  %vm1656 = vmor %vm1654, %vm1655
  %v1657 = vsel %vm1656, %v1649, %v1653
  %v1658 = vand.u32 2147483647, %v745
  %vm1659 = vcmp.eq.f32.partialorder %v1658, 8.507059e+37
  %v1660 = vand.u32 %v745, 2147483648
  %v1661 = vor.u32 1.1754944e-38, %v1660
  %v1662 = vsel %vm1659, %v1661, %v1657
  %v1663 = vmul.f32 1.0, %v1662
  %v1664 = vrcp.pop %v746
  %v1665 = vmul.f32 %v746, %v1664
  %v1666 = vsub.f32 1.0, %v1665
  %v1667 = vmul.f32 %v1664, %v1666
  %v1668 = vadd.f32 %v1664, %v1667
  %vm1669 = vweird.f32 %v746
  %vm1670 = vweird.f32 %v1664
  %vm1671 = vmor %vm1669, %vm1670
  %v1672 = vsel %vm1671, %v1664, %v1668
  %v1673 = vand.u32 2147483647, %v746
  %vm1674 = vcmp.eq.f32.partialorder %v1673, 8.507059e+37
  %v1675 = vand.u32 %v746, 2147483648
  %v1676 = vor.u32 1.1754944e-38, %v1675
  %v1677 = vsel %vm1674, %v1676, %v1672
  %v1678 = vmul.f32 1.0, %v1677
  %v1679 = vrcp.pop %v747
  %v1680 = vmul.f32 %v747, %v1679
  %v1681 = vsub.f32 1.0, %v1680
  %v1682 = vmul.f32 %v1679, %v1681
  %v1683 = vadd.f32 %v1679, %v1682
  %vm1684 = vweird.f32 %v747
  %vm1685 = vweird.f32 %v1679
  %vm1686 = vmor %vm1684, %vm1685
  %v1687 = vsel %vm1686, %v1679, %v1683
  %v1688 = vand.u32 2147483647, %v747
  %vm1689 = vcmp.eq.f32.partialorder %v1688, 8.507059e+37
  %v1690 = vand.u32 %v747, 2147483648
  %v1691 = vor.u32 1.1754944e-38, %v1690
  %v1692 = vsel %vm1689, %v1691, %v1687
  %v1693 = vmul.f32 1.0, %v1692
  %v1694 = vrcp.pop %v748
  %v1695 = vmul.f32 %v748, %v1694
  %v1696 = vsub.f32 1.0, %v1695
  %v1697 = vmul.f32 %v1694, %v1696
  %v1698 = vadd.f32 %v1694, %v1697
  %vm1699 = vweird.f32 %v748
  %vm1700 = vweird.f32 %v1694
  %vm1701 = vmor %vm1699, %vm1700
  %v1702 = vsel %vm1701, %v1694, %v1698
  %v1703 = vand.u32 2147483647, %v748
  %vm1704 = vcmp.eq.f32.partialorder %v1703, 8.507059e+37
  %v1705 = vand.u32 %v748, 2147483648
  %v1706 = vor.u32 1.1754944e-38, %v1705
  %v1707 = vsel %vm1704, %v1706, %v1702
  %v1708 = vmul.f32 1.0, %v1707
  %v1709 = vstv %s492
  %v1710 = vmul.f32 %v1709, %v763
  %v1711 = vmul.f32 %v1709, %v778
  %v1712 = vmul.f32 %v1709, %v793
  %v1713 = vmul.f32 %v1709, %v808
  %v1714 = vmul.f32 %v1709, %v823
  %v1715 = vmul.f32 %v1709, %v838
  %v1716 = vmul.f32 %v1709, %v853
  %v1717 = vmul.f32 %v1709, %v868
  %v1718 = vmul.f32 %v1709, %v883
  %v1719 = vmul.f32 %v1709, %v898
  %v1720 = vmul.f32 %v1709, %v913
  %v1721 = vmul.f32 %v1709, %v928
  %v1722 = vmul.f32 %v1709, %v943
  %v1723 = vmul.f32 %v1709, %v958
  %v1724 = vmul.f32 %v1709, %v973
  %v1725 = vmul.f32 %v1709, %v988
  %v1726 = vmul.f32 %v1709, %v1003
  %v1727 = vmul.f32 %v1709, %v1018
  %v1728 = vmul.f32 %v1709, %v1033
  %v1729 = vmul.f32 %v1709, %v1048
  %v1730 = vmul.f32 %v1709, %v1063
  %v1731 = vmul.f32 %v1709, %v1078
  %v1732 = vmul.f32 %v1709, %v1093
  %v1733 = vmul.f32 %v1709, %v1108
  %v1734 = vmul.f32 %v1709, %v1123
  %v1735 = vmul.f32 %v1709, %v1138
  %v1736 = vmul.f32 %v1709, %v1153
  %v1737 = vmul.f32 %v1709, %v1168
  %v1738 = vmul.f32 %v1709, %v1183
  %v1739 = vmul.f32 %v1709, %v1198
  %v1740 = vmul.f32 %v1709, %v1213
  %v1741 = vmul.f32 %v1709, %v1228
  %v1742 = vmul.f32 %v1709, %v1243
  %v1743 = vmul.f32 %v1709, %v1258
  %v1744 = vmul.f32 %v1709, %v1273
  %v1745 = vmul.f32 %v1709, %v1288
  %v1746 = vmul.f32 %v1709, %v1303
  %v1747 = vmul.f32 %v1709, %v1318
  %v1748 = vmul.f32 %v1709, %v1333
  %v1749 = vmul.f32 %v1709, %v1348
  %v1750 = vmul.f32 %v1709, %v1363
  %v1751 = vmul.f32 %v1709, %v1378
  %v1752 = vmul.f32 %v1709, %v1393
  %v1753 = vmul.f32 %v1709, %v1408
  %v1754 = vmul.f32 %v1709, %v1423
  %v1755 = vmul.f32 %v1709, %v1438
  %v1756 = vmul.f32 %v1709, %v1453
  %v1757 = vmul.f32 %v1709, %v1468
  %v1758 = vmul.f32 %v1709, %v1483
  %v1759 = vmul.f32 %v1709, %v1498
  %v1760 = vmul.f32 %v1709, %v1513
  %v1761 = vmul.f32 %v1709, %v1528
  %v1762 = vmul.f32 %v1709, %v1543
  %v1763 = vmul.f32 %v1709, %v1558
  %v1764 = vmul.f32 %v1709, %v1573
  %v1765 = vmul.f32 %v1709, %v1588
  %v1766 = vmul.f32 %v1709, %v1603
  %v1767 = vmul.f32 %v1709, %v1618
  %v1768 = vmul.f32 %v1709, %v1633
  %v1769 = vmul.f32 %v1709, %v1648
  %v1770 = vmul.f32 %v1709, %v1663
  %v1771 = vmul.f32 %v1709, %v1678
  %v1772 = vmul.f32 %v1709, %v1693
  %v1773 = vmul.f32 %v1709, %v1708
  %v1774 = vsub.f32 %v1710, %v1709
  %v1775 = vsub.f32 %v1711, %v1709
  %v1776 = vsub.f32 %v1712, %v1709
  %v1777 = vsub.f32 %v1713, %v1709
  %v1778 = vsub.f32 %v1714, %v1709
  %v1779 = vsub.f32 %v1715, %v1709
  %v1780 = vsub.f32 %v1716, %v1709
  %v1781 = vsub.f32 %v1717, %v1709
  %v1782 = vsub.f32 %v1718, %v1709
  %v1783 = vsub.f32 %v1719, %v1709
  %v1784 = vsub.f32 %v1720, %v1709
  %v1785 = vsub.f32 %v1721, %v1709
  %v1786 = vsub.f32 %v1722, %v1709
  %v1787 = vsub.f32 %v1723, %v1709
  %v1788 = vsub.f32 %v1724, %v1709
  %v1789 = vsub.f32 %v1725, %v1709
  %v1790 = vsub.f32 %v1726, %v1709
  %v1791 = vsub.f32 %v1727, %v1709
  %v1792 = vsub.f32 %v1728, %v1709
  %v1793 = vsub.f32 %v1729, %v1709
  %v1794 = vsub.f32 %v1730, %v1709
  %v1795 = vsub.f32 %v1731, %v1709
  %v1796 = vsub.f32 %v1732, %v1709
  %v1797 = vsub.f32 %v1733, %v1709
  %v1798 = vsub.f32 %v1734, %v1709
  %v1799 = vsub.f32 %v1735, %v1709
  %v1800 = vsub.f32 %v1736, %v1709
  %v1801 = vsub.f32 %v1737, %v1709
  %v1802 = vsub.f32 %v1738, %v1709
  %v1803 = vsub.f32 %v1739, %v1709
  %v1804 = vsub.f32 %v1740, %v1709
  %v1805 = vsub.f32 %v1741, %v1709
  %v1806 = vsub.f32 %v1742, %v1709
  %v1807 = vsub.f32 %v1743, %v1709
  %v1808 = vsub.f32 %v1744, %v1709
  %v1809 = vsub.f32 %v1745, %v1709
  %v1810 = vsub.f32 %v1746, %v1709
  %v1811 = vsub.f32 %v1747, %v1709
  %v1812 = vsub.f32 %v1748, %v1709
  %v1813 = vsub.f32 %v1749, %v1709
  %v1814 = vsub.f32 %v1750, %v1709
  %v1815 = vsub.f32 %v1751, %v1709
  %v1816 = vsub.f32 %v1752, %v1709
  %v1817 = vsub.f32 %v1753, %v1709
  %v1818 = vsub.f32 %v1754, %v1709
  %v1819 = vsub.f32 %v1755, %v1709
  %v1820 = vsub.f32 %v1756, %v1709
  %v1821 = vsub.f32 %v1757, %v1709
  %v1822 = vsub.f32 %v1758, %v1709
  %v1823 = vsub.f32 %v1759, %v1709
  %v1824 = vsub.f32 %v1760, %v1709
  %v1825 = vsub.f32 %v1761, %v1709
  %v1826 = vsub.f32 %v1762, %v1709
  %v1827 = vsub.f32 %v1763, %v1709
  %v1828 = vsub.f32 %v1764, %v1709
  %v1829 = vsub.f32 %v1765, %v1709
  %v1830 = vsub.f32 %v1766, %v1709
  %v1831 = vsub.f32 %v1767, %v1709
  %v1832 = vsub.f32 %v1768, %v1709
  %v1833 = vsub.f32 %v1769, %v1709
  %v1834 = vsub.f32 %v1770, %v1709
  %v1835 = vsub.f32 %v1771, %v1709
  %v1836 = vsub.f32 %v1772, %v1709
  %v1837 = vsub.f32 %v1773, %v1709
  %1839 = vset.pattern.permute.xlu0 16
  %1840 = vperm.xlu0 %1839, %v1774
  %v1841 = vpop.permute.xlu0 %1840
  %1844 = vset.pattern.permute.xlu0 16
  %1845 = vperm.xlu0 %1844, %v1775
  %v1846 = vpop.permute.xlu0 %1845
  %1849 = vset.pattern.permute.xlu0 16
  %1850 = vperm.xlu0 %1849, %v1776
  %v1851 = vpop.permute.xlu0 %1850
  %1854 = vset.pattern.permute.xlu0 16
  %1855 = vperm.xlu0 %1854, %v1777
  %v1856 = vpop.permute.xlu0 %1855
  %1859 = vset.pattern.permute.xlu0 16
  %1860 = vperm.xlu0 %1859, %v1778
  %v1861 = vpop.permute.xlu0 %1860
  %1864 = vset.pattern.permute.xlu0 16
  %1865 = vperm.xlu0 %1864, %v1779
  %v1866 = vpop.permute.xlu0 %1865
  %1869 = vset.pattern.permute.xlu0 16
  %1870 = vperm.xlu0 %1869, %v1780
  %v1871 = vpop.permute.xlu0 %1870
  %1874 = vset.pattern.permute.xlu0 16
  %1875 = vperm.xlu0 %1874, %v1781
  %v1876 = vpop.permute.xlu0 %1875
  %1879 = vset.pattern.permute.xlu0 16
  %1880 = vperm.xlu0 %1879, %v1782
  %v1881 = vpop.permute.xlu0 %1880
  %1884 = vset.pattern.permute.xlu0 16
  %1885 = vperm.xlu0 %1884, %v1783
  %v1886 = vpop.permute.xlu0 %1885
  %1889 = vset.pattern.permute.xlu0 16
  %1890 = vperm.xlu0 %1889, %v1784
  %v1891 = vpop.permute.xlu0 %1890
  %1894 = vset.pattern.permute.xlu0 16
  %1895 = vperm.xlu0 %1894, %v1785
  %v1896 = vpop.permute.xlu0 %1895
  %1899 = vset.pattern.permute.xlu0 16
  %1900 = vperm.xlu0 %1899, %v1786
  %v1901 = vpop.permute.xlu0 %1900
  %1904 = vset.pattern.permute.xlu0 16
  %1905 = vperm.xlu0 %1904, %v1787
  %v1906 = vpop.permute.xlu0 %1905
  %1909 = vset.pattern.permute.xlu0 16
  %1910 = vperm.xlu0 %1909, %v1788
  %v1911 = vpop.permute.xlu0 %1910
  %1914 = vset.pattern.permute.xlu0 16
  %1915 = vperm.xlu0 %1914, %v1789
  %v1916 = vpop.permute.xlu0 %1915
  %1919 = vset.pattern.permute.xlu0 16
  %1920 = vperm.xlu0 %1919, %v1790
  %v1921 = vpop.permute.xlu0 %1920
  %1924 = vset.pattern.permute.xlu0 16
  %1925 = vperm.xlu0 %1924, %v1791
  %v1926 = vpop.permute.xlu0 %1925
  %1929 = vset.pattern.permute.xlu0 16
  %1930 = vperm.xlu0 %1929, %v1792
  %v1931 = vpop.permute.xlu0 %1930
  %1934 = vset.pattern.permute.xlu0 16
  %1935 = vperm.xlu0 %1934, %v1793
  %v1936 = vpop.permute.xlu0 %1935
  %1939 = vset.pattern.permute.xlu0 16
  %1940 = vperm.xlu0 %1939, %v1794
  %v1941 = vpop.permute.xlu0 %1940
  %1944 = vset.pattern.permute.xlu0 16
  %1945 = vperm.xlu0 %1944, %v1795
  %v1946 = vpop.permute.xlu0 %1945
  %1949 = vset.pattern.permute.xlu0 16
  %1950 = vperm.xlu0 %1949, %v1796
  %v1951 = vpop.permute.xlu0 %1950
  %1954 = vset.pattern.permute.xlu0 16
  %1955 = vperm.xlu0 %1954, %v1797
  %v1956 = vpop.permute.xlu0 %1955
  %1959 = vset.pattern.permute.xlu0 16
  %1960 = vperm.xlu0 %1959, %v1798
  %v1961 = vpop.permute.xlu0 %1960
  %1964 = vset.pattern.permute.xlu0 16
  %1965 = vperm.xlu0 %1964, %v1799
  %v1966 = vpop.permute.xlu0 %1965
  %1969 = vset.pattern.permute.xlu0 16
  %1970 = vperm.xlu0 %1969, %v1800
  %v1971 = vpop.permute.xlu0 %1970
  %1974 = vset.pattern.permute.xlu0 16
  %1975 = vperm.xlu0 %1974, %v1801
  %v1976 = vpop.permute.xlu0 %1975
  %1979 = vset.pattern.permute.xlu0 16
  %1980 = vperm.xlu0 %1979, %v1802
  %v1981 = vpop.permute.xlu0 %1980
  %1984 = vset.pattern.permute.xlu0 16
  %1985 = vperm.xlu0 %1984, %v1803
  %v1986 = vpop.permute.xlu0 %1985
  %1989 = vset.pattern.permute.xlu0 16
  %1990 = vperm.xlu0 %1989, %v1804
  %v1991 = vpop.permute.xlu0 %1990
  %1994 = vset.pattern.permute.xlu0 16
  %1995 = vperm.xlu0 %1994, %v1805
  %v1996 = vpop.permute.xlu0 %1995
  %1999 = vset.pattern.permute.xlu0 16
  %2000 = vperm.xlu0 %1999, %v1806
  %v2001 = vpop.permute.xlu0 %2000
  %2004 = vset.pattern.permute.xlu0 16
  %2005 = vperm.xlu0 %2004, %v1807
  %v2006 = vpop.permute.xlu0 %2005
  %2009 = vset.pattern.permute.xlu0 16
  %2010 = vperm.xlu0 %2009, %v1808
  %v2011 = vpop.permute.xlu0 %2010
  %2014 = vset.pattern.permute.xlu0 16
  %2015 = vperm.xlu0 %2014, %v1809
  %v2016 = vpop.permute.xlu0 %2015
  %2019 = vset.pattern.permute.xlu0 16
  %2020 = vperm.xlu0 %2019, %v1810
  %v2021 = vpop.permute.xlu0 %2020
  %2024 = vset.pattern.permute.xlu0 16
  %2025 = vperm.xlu0 %2024, %v1811
  %v2026 = vpop.permute.xlu0 %2025
  %2029 = vset.pattern.permute.xlu0 16
  %2030 = vperm.xlu0 %2029, %v1812
  %v2031 = vpop.permute.xlu0 %2030
  %2034 = vset.pattern.permute.xlu0 16
  %2035 = vperm.xlu0 %2034, %v1813
  %v2036 = vpop.permute.xlu0 %2035
  %2039 = vset.pattern.permute.xlu0 16
  %2040 = vperm.xlu0 %2039, %v1814
  %v2041 = vpop.permute.xlu0 %2040
  %2044 = vset.pattern.permute.xlu0 16
  %2045 = vperm.xlu0 %2044, %v1815
  %v2046 = vpop.permute.xlu0 %2045
  %2049 = vset.pattern.permute.xlu0 16
  %2050 = vperm.xlu0 %2049, %v1816
  %v2051 = vpop.permute.xlu0 %2050
  %2054 = vset.pattern.permute.xlu0 16
  %2055 = vperm.xlu0 %2054, %v1817
  %v2056 = vpop.permute.xlu0 %2055
  %2059 = vset.pattern.permute.xlu0 16
  %2060 = vperm.xlu0 %2059, %v1818
  %v2061 = vpop.permute.xlu0 %2060
  %2064 = vset.pattern.permute.xlu0 16
  %2065 = vperm.xlu0 %2064, %v1819
  %v2066 = vpop.permute.xlu0 %2065
  %2069 = vset.pattern.permute.xlu0 16
  %2070 = vperm.xlu0 %2069, %v1820
  %v2071 = vpop.permute.xlu0 %2070
  %2074 = vset.pattern.permute.xlu0 16
  %2075 = vperm.xlu0 %2074, %v1821
  %v2076 = vpop.permute.xlu0 %2075
  %2079 = vset.pattern.permute.xlu0 16
  %2080 = vperm.xlu0 %2079, %v1822
  %v2081 = vpop.permute.xlu0 %2080
  %2084 = vset.pattern.permute.xlu0 16
  %2085 = vperm.xlu0 %2084, %v1823
  %v2086 = vpop.permute.xlu0 %2085
  %2089 = vset.pattern.permute.xlu0 16
  %2090 = vperm.xlu0 %2089, %v1824
  %v2091 = vpop.permute.xlu0 %2090
  %2094 = vset.pattern.permute.xlu0 16
  %2095 = vperm.xlu0 %2094, %v1825
  %v2096 = vpop.permute.xlu0 %2095
  %2099 = vset.pattern.permute.xlu0 16
  %2100 = vperm.xlu0 %2099, %v1826
  %v2101 = vpop.permute.xlu0 %2100
  %2104 = vset.pattern.permute.xlu0 16
  %2105 = vperm.xlu0 %2104, %v1827
  %v2106 = vpop.permute.xlu0 %2105
  %2109 = vset.pattern.permute.xlu0 16
  %2110 = vperm.xlu0 %2109, %v1828
  %v2111 = vpop.permute.xlu0 %2110
  %2114 = vset.pattern.permute.xlu0 16
  %2115 = vperm.xlu0 %2114, %v1829
  %v2116 = vpop.permute.xlu0 %2115
  %2119 = vset.pattern.permute.xlu0 16
  %2120 = vperm.xlu0 %2119, %v1830
  %v2121 = vpop.permute.xlu0 %2120
  %2124 = vset.pattern.permute.xlu0 16
  %2125 = vperm.xlu0 %2124, %v1831
  %v2126 = vpop.permute.xlu0 %2125
  %2129 = vset.pattern.permute.xlu0 16
  %2130 = vperm.xlu0 %2129, %v1832
  %v2131 = vpop.permute.xlu0 %2130
  %2134 = vset.pattern.permute.xlu0 16
  %2135 = vperm.xlu0 %2134, %v1833
  %v2136 = vpop.permute.xlu0 %2135
  %2139 = vset.pattern.permute.xlu0 16
  %2140 = vperm.xlu0 %2139, %v1834
  %v2141 = vpop.permute.xlu0 %2140
  %2144 = vset.pattern.permute.xlu0 16
  %2145 = vperm.xlu0 %2144, %v1835
  %v2146 = vpop.permute.xlu0 %2145
  %2149 = vset.pattern.permute.xlu0 16
  %2150 = vperm.xlu0 %2149, %v1836
  %v2151 = vpop.permute.xlu0 %2150
  %2154 = vset.pattern.permute.xlu0 16
  %2155 = vperm.xlu0 %2154, %v1837
  %v2156 = vpop.permute.xlu0 %2155
  %v2158 = vadd.f32 %v301, %v1841
  %v2159 = vadd.f32 %v304, %v1846
  %v2160 = vadd.f32 %v307, %v1851
  %v2161 = vadd.f32 %v310, %v1856
  %v2162 = vadd.f32 %v313, %v1861
  %v2163 = vadd.f32 %v316, %v1866
  %v2164 = vadd.f32 %v319, %v1871
  %v2165 = vadd.f32 %v322, %v1876
  %v2166 = vadd.f32 %v325, %v1881
  %v2167 = vadd.f32 %v328, %v1886
  %v2168 = vadd.f32 %v331, %v1891
  %v2169 = vadd.f32 %v334, %v1896
  %v2170 = vadd.f32 %v337, %v1901
  %v2171 = vadd.f32 %v340, %v1906
  %v2172 = vadd.f32 %v343, %v1911
  %v2173 = vadd.f32 %v346, %v1916
  %v2174 = vadd.f32 %v349, %v1921
  %v2175 = vadd.f32 %v352, %v1926
  %v2176 = vadd.f32 %v355, %v1931
  %v2177 = vadd.f32 %v358, %v1936
  %v2178 = vadd.f32 %v361, %v1941
  %v2179 = vadd.f32 %v364, %v1946
  %v2180 = vadd.f32 %v367, %v1951
  %v2181 = vadd.f32 %v370, %v1956
  %v2182 = vadd.f32 %v373, %v1961
  %v2183 = vadd.f32 %v376, %v1966
  %v2184 = vadd.f32 %v379, %v1971
  %v2185 = vadd.f32 %v382, %v1976
  %v2186 = vadd.f32 %v385, %v1981
  %v2187 = vadd.f32 %v388, %v1986
  %v2188 = vadd.f32 %v391, %v1991
  %v2189 = vadd.f32 %v394, %v1996
  %v2190 = vadd.f32 %v397, %v2001
  %v2191 = vadd.f32 %v400, %v2006
  %v2192 = vadd.f32 %v403, %v2011
  %v2193 = vadd.f32 %v406, %v2016
  %v2194 = vadd.f32 %v409, %v2021
  %v2195 = vadd.f32 %v412, %v2026
  %v2196 = vadd.f32 %v415, %v2031
  %v2197 = vadd.f32 %v418, %v2036
  %v2198 = vadd.f32 %v421, %v2041
  %v2199 = vadd.f32 %v424, %v2046
  %v2200 = vadd.f32 %v427, %v2051
  %v2201 = vadd.f32 %v430, %v2056
  %v2202 = vadd.f32 %v433, %v2061
  %v2203 = vadd.f32 %v436, %v2066
  %v2204 = vadd.f32 %v439, %v2071
  %v2205 = vadd.f32 %v442, %v2076
  %v2206 = vadd.f32 %v445, %v2081
  %v2207 = vadd.f32 %v448, %v2086
  %v2208 = vadd.f32 %v451, %v2091
  %v2209 = vadd.f32 %v454, %v2096
  %v2210 = vadd.f32 %v457, %v2101
  %v2211 = vadd.f32 %v460, %v2106
  %v2212 = vadd.f32 %v463, %v2111
  %v2213 = vadd.f32 %v466, %v2116
  %v2214 = vadd.f32 %v469, %v2121
  %v2215 = vadd.f32 %v472, %v2126
  %v2216 = vadd.f32 %v475, %v2131
  %v2217 = vadd.f32 %v478, %v2136
  %v2218 = vadd.f32 %v481, %v2141
  %v2219 = vadd.f32 %v484, %v2146
  %v2220 = vadd.f32 %v487, %v2151
  %v2221 = vadd.f32 %v490, %v2156
  %v2222 = vmax.f32 %v2158, 0.0
  %v2223 = vmax.f32 %v2159, 0.0
  %v2224 = vmax.f32 %v2160, 0.0
  %v2225 = vmax.f32 %v2161, 0.0
  %v2226 = vmax.f32 %v2162, 0.0
  %v2227 = vmax.f32 %v2163, 0.0
  %v2228 = vmax.f32 %v2164, 0.0
  %v2229 = vmax.f32 %v2165, 0.0
  %v2230 = vmax.f32 %v2166, 0.0
  %v2231 = vmax.f32 %v2167, 0.0
  %v2232 = vmax.f32 %v2168, 0.0
  %v2233 = vmax.f32 %v2169, 0.0
  %v2234 = vmax.f32 %v2170, 0.0
  %v2235 = vmax.f32 %v2171, 0.0
  %v2236 = vmax.f32 %v2172, 0.0
  %v2237 = vmax.f32 %v2173, 0.0
  %v2238 = vmax.f32 %v2174, 0.0
  %v2239 = vmax.f32 %v2175, 0.0
  %v2240 = vmax.f32 %v2176, 0.0
  %v2241 = vmax.f32 %v2177, 0.0
  %v2242 = vmax.f32 %v2178, 0.0
  %v2243 = vmax.f32 %v2179, 0.0
  %v2244 = vmax.f32 %v2180, 0.0
  %v2245 = vmax.f32 %v2181, 0.0
  %v2246 = vmax.f32 %v2182, 0.0
  %v2247 = vmax.f32 %v2183, 0.0
  %v2248 = vmax.f32 %v2184, 0.0
  %v2249 = vmax.f32 %v2185, 0.0
  %v2250 = vmax.f32 %v2186, 0.0
  %v2251 = vmax.f32 %v2187, 0.0
  %v2252 = vmax.f32 %v2188, 0.0
  %v2253 = vmax.f32 %v2189, 0.0
  %v2254 = vmax.f32 %v2190, 0.0
  %v2255 = vmax.f32 %v2191, 0.0
  %v2256 = vmax.f32 %v2192, 0.0
  %v2257 = vmax.f32 %v2193, 0.0
  %v2258 = vmax.f32 %v2194, 0.0
  %v2259 = vmax.f32 %v2195, 0.0
  %v2260 = vmax.f32 %v2196, 0.0
  %v2261 = vmax.f32 %v2197, 0.0
  %v2262 = vmax.f32 %v2198, 0.0
  %v2263 = vmax.f32 %v2199, 0.0
  %v2264 = vmax.f32 %v2200, 0.0
  %v2265 = vmax.f32 %v2201, 0.0
  %v2266 = vmax.f32 %v2202, 0.0
  %v2267 = vmax.f32 %v2203, 0.0
  %v2268 = vmax.f32 %v2204, 0.0
  %v2269 = vmax.f32 %v2205, 0.0
  %v2270 = vmax.f32 %v2206, 0.0
  %v2271 = vmax.f32 %v2207, 0.0
  %v2272 = vmax.f32 %v2208, 0.0
  %v2273 = vmax.f32 %v2209, 0.0
  %v2274 = vmax.f32 %v2210, 0.0
  %v2275 = vmax.f32 %v2211, 0.0
  %v2276 = vmax.f32 %v2212, 0.0
  %v2277 = vmax.f32 %v2213, 0.0
  %v2278 = vmax.f32 %v2214, 0.0
  %v2279 = vmax.f32 %v2215, 0.0
  %v2280 = vmax.f32 %v2216, 0.0
  %v2281 = vmax.f32 %v2217, 0.0
  %v2282 = vmax.f32 %v2218, 0.0
  %v2283 = vmax.f32 %v2219, 0.0
  %v2284 = vmax.f32 %v2220, 0.0
  %v2285 = vmax.f32 %v2221, 0.0
  %v2286 = vsub.f32 0.0, %v301
  %v2287 = vsub.f32 0.0, %v304
  %v2288 = vsub.f32 0.0, %v307
  %v2289 = vsub.f32 0.0, %v310
  %v2290 = vsub.f32 0.0, %v313
  %v2291 = vsub.f32 0.0, %v316
  %v2292 = vsub.f32 0.0, %v319
  %v2293 = vsub.f32 0.0, %v322
  %v2294 = vsub.f32 0.0, %v325
  %v2295 = vsub.f32 0.0, %v328
  %v2296 = vsub.f32 0.0, %v331
  %v2297 = vsub.f32 0.0, %v334
  %v2298 = vsub.f32 0.0, %v337
  %v2299 = vsub.f32 0.0, %v340
  %v2300 = vsub.f32 0.0, %v343
  %v2301 = vsub.f32 0.0, %v346
  %v2302 = vsub.f32 0.0, %v349
  %v2303 = vsub.f32 0.0, %v352
  %v2304 = vsub.f32 0.0, %v355
  %v2305 = vsub.f32 0.0, %v358
  %v2306 = vsub.f32 0.0, %v361
  %v2307 = vsub.f32 0.0, %v364
  %v2308 = vsub.f32 0.0, %v367
  %v2309 = vsub.f32 0.0, %v370
  %v2310 = vsub.f32 0.0, %v373
  %v2311 = vsub.f32 0.0, %v376
  %v2312 = vsub.f32 0.0, %v379
  %v2313 = vsub.f32 0.0, %v382
  %v2314 = vsub.f32 0.0, %v385
  %v2315 = vsub.f32 0.0, %v388
  %v2316 = vsub.f32 0.0, %v391
  %v2317 = vsub.f32 0.0, %v394
  %v2318 = vsub.f32 0.0, %v397
  %v2319 = vsub.f32 0.0, %v400
  %v2320 = vsub.f32 0.0, %v403
  %v2321 = vsub.f32 0.0, %v406
  %v2322 = vsub.f32 0.0, %v409
  %v2323 = vsub.f32 0.0, %v412
  %v2324 = vsub.f32 0.0, %v415
  %v2325 = vsub.f32 0.0, %v418
  %v2326 = vsub.f32 0.0, %v421
  %v2327 = vsub.f32 0.0, %v424
  %v2328 = vsub.f32 0.0, %v427
  %v2329 = vsub.f32 0.0, %v430
  %v2330 = vsub.f32 0.0, %v433
  %v2331 = vsub.f32 0.0, %v436
  %v2332 = vsub.f32 0.0, %v439
  %v2333 = vsub.f32 0.0, %v442
  %v2334 = vsub.f32 0.0, %v445
  %v2335 = vsub.f32 0.0, %v448
  %v2336 = vsub.f32 0.0, %v451
  %v2337 = vsub.f32 0.0, %v454
  %v2338 = vsub.f32 0.0, %v457
  %v2339 = vsub.f32 0.0, %v460
  %v2340 = vsub.f32 0.0, %v463
  %v2341 = vsub.f32 0.0, %v466
  %v2342 = vsub.f32 0.0, %v469
  %v2343 = vsub.f32 0.0, %v472
  %v2344 = vsub.f32 0.0, %v475
  %v2345 = vsub.f32 0.0, %v478
  %v2346 = vsub.f32 0.0, %v481
  %v2347 = vsub.f32 0.0, %v484
  %v2348 = vsub.f32 0.0, %v487
  %v2349 = vsub.f32 0.0, %v490
  %v2350 = vadd.f32 %v2286, %v1841
  %v2351 = vadd.f32 %v2287, %v1846
  %v2352 = vadd.f32 %v2288, %v1851
  %v2353 = vadd.f32 %v2289, %v1856
  %v2354 = vadd.f32 %v2290, %v1861
  %v2355 = vadd.f32 %v2291, %v1866
  %v2356 = vadd.f32 %v2292, %v1871
  %v2357 = vadd.f32 %v2293, %v1876
  %v2358 = vadd.f32 %v2294, %v1881
  %v2359 = vadd.f32 %v2295, %v1886
  %v2360 = vadd.f32 %v2296, %v1891
  %v2361 = vadd.f32 %v2297, %v1896
  %v2362 = vadd.f32 %v2298, %v1901
  %v2363 = vadd.f32 %v2299, %v1906
  %v2364 = vadd.f32 %v2300, %v1911
  %v2365 = vadd.f32 %v2301, %v1916
  %v2366 = vadd.f32 %v2302, %v1921
  %v2367 = vadd.f32 %v2303, %v1926
  %v2368 = vadd.f32 %v2304, %v1931
  %v2369 = vadd.f32 %v2305, %v1936
  %v2370 = vadd.f32 %v2306, %v1941
  %v2371 = vadd.f32 %v2307, %v1946
  %v2372 = vadd.f32 %v2308, %v1951
  %v2373 = vadd.f32 %v2309, %v1956
  %v2374 = vadd.f32 %v2310, %v1961
  %v2375 = vadd.f32 %v2311, %v1966
  %v2376 = vadd.f32 %v2312, %v1971
  %v2377 = vadd.f32 %v2313, %v1976
  %v2378 = vadd.f32 %v2314, %v1981
  %v2379 = vadd.f32 %v2315, %v1986
  %v2380 = vadd.f32 %v2316, %v1991
  %v2381 = vadd.f32 %v2317, %v1996
  %v2382 = vadd.f32 %v2318, %v2001
  %v2383 = vadd.f32 %v2319, %v2006
  %v2384 = vadd.f32 %v2320, %v2011
  %v2385 = vadd.f32 %v2321, %v2016
  %v2386 = vadd.f32 %v2322, %v2021
  %v2387 = vadd.f32 %v2323, %v2026
  %v2388 = vadd.f32 %v2324, %v2031
  %v2389 = vadd.f32 %v2325, %v2036
  %v2390 = vadd.f32 %v2326, %v2041
  %v2391 = vadd.f32 %v2327, %v2046
  %v2392 = vadd.f32 %v2328, %v2051
  %v2393 = vadd.f32 %v2329, %v2056
  %v2394 = vadd.f32 %v2330, %v2061
  %v2395 = vadd.f32 %v2331, %v2066
  %v2396 = vadd.f32 %v2332, %v2071
  %v2397 = vadd.f32 %v2333, %v2076
  %v2398 = vadd.f32 %v2334, %v2081
  %v2399 = vadd.f32 %v2335, %v2086
  %v2400 = vadd.f32 %v2336, %v2091
  %v2401 = vadd.f32 %v2337, %v2096
  %v2402 = vadd.f32 %v2338, %v2101
  %v2403 = vadd.f32 %v2339, %v2106
  %v2404 = vadd.f32 %v2340, %v2111
  %v2405 = vadd.f32 %v2341, %v2116
  %v2406 = vadd.f32 %v2342, %v2121
  %v2407 = vadd.f32 %v2343, %v2126
  %v2408 = vadd.f32 %v2344, %v2131
  %v2409 = vadd.f32 %v2345, %v2136
  %v2410 = vadd.f32 %v2346, %v2141
  %v2411 = vadd.f32 %v2347, %v2146
  %v2412 = vadd.f32 %v2348, %v2151
  %v2413 = vadd.f32 %v2349, %v2156
  %v2414 = vmax.f32 %v2350, 0.0
  %v2415 = vmax.f32 %v2351, 0.0
  %v2416 = vmax.f32 %v2352, 0.0
  %v2417 = vmax.f32 %v2353, 0.0
  %v2418 = vmax.f32 %v2354, 0.0
  %v2419 = vmax.f32 %v2355, 0.0
  %v2420 = vmax.f32 %v2356, 0.0
  %v2421 = vmax.f32 %v2357, 0.0
  %v2422 = vmax.f32 %v2358, 0.0
  %v2423 = vmax.f32 %v2359, 0.0
  %v2424 = vmax.f32 %v2360, 0.0
  %v2425 = vmax.f32 %v2361, 0.0
  %v2426 = vmax.f32 %v2362, 0.0
  %v2427 = vmax.f32 %v2363, 0.0
  %v2428 = vmax.f32 %v2364, 0.0
  %v2429 = vmax.f32 %v2365, 0.0
  %v2430 = vmax.f32 %v2366, 0.0
  %v2431 = vmax.f32 %v2367, 0.0
  %v2432 = vmax.f32 %v2368, 0.0
  %v2433 = vmax.f32 %v2369, 0.0
  %v2434 = vmax.f32 %v2370, 0.0
  %v2435 = vmax.f32 %v2371, 0.0
  %v2436 = vmax.f32 %v2372, 0.0
  %v2437 = vmax.f32 %v2373, 0.0
  %v2438 = vmax.f32 %v2374, 0.0
  %v2439 = vmax.f32 %v2375, 0.0
  %v2440 = vmax.f32 %v2376, 0.0
  %v2441 = vmax.f32 %v2377, 0.0
  %v2442 = vmax.f32 %v2378, 0.0
  %v2443 = vmax.f32 %v2379, 0.0
  %v2444 = vmax.f32 %v2380, 0.0
  %v2445 = vmax.f32 %v2381, 0.0
  %v2446 = vmax.f32 %v2382, 0.0
  %v2447 = vmax.f32 %v2383, 0.0
  %v2448 = vmax.f32 %v2384, 0.0
  %v2449 = vmax.f32 %v2385, 0.0
  %v2450 = vmax.f32 %v2386, 0.0
  %v2451 = vmax.f32 %v2387, 0.0
  %v2452 = vmax.f32 %v2388, 0.0
  %v2453 = vmax.f32 %v2389, 0.0
  %v2454 = vmax.f32 %v2390, 0.0
  %v2455 = vmax.f32 %v2391, 0.0
  %v2456 = vmax.f32 %v2392, 0.0
  %v2457 = vmax.f32 %v2393, 0.0
  %v2458 = vmax.f32 %v2394, 0.0
  %v2459 = vmax.f32 %v2395, 0.0
  %v2460 = vmax.f32 %v2396, 0.0
  %v2461 = vmax.f32 %v2397, 0.0
  %v2462 = vmax.f32 %v2398, 0.0
  %v2463 = vmax.f32 %v2399, 0.0
  %v2464 = vmax.f32 %v2400, 0.0
  %v2465 = vmax.f32 %v2401, 0.0
  %v2466 = vmax.f32 %v2402, 0.0
  %v2467 = vmax.f32 %v2403, 0.0
  %v2468 = vmax.f32 %v2404, 0.0
  %v2469 = vmax.f32 %v2405, 0.0
  %v2470 = vmax.f32 %v2406, 0.0
  %v2471 = vmax.f32 %v2407, 0.0
  %v2472 = vmax.f32 %v2408, 0.0
  %v2473 = vmax.f32 %v2409, 0.0
  %v2474 = vmax.f32 %v2410, 0.0
  %v2475 = vmax.f32 %v2411, 0.0
  %v2476 = vmax.f32 %v2412, 0.0
  %v2477 = vmax.f32 %v2413, 0.0
  %v2478 = vsub.f32 %v2222, %v2414
  %v2479 = vsub.f32 %v2223, %v2415
  %v2480 = vsub.f32 %v2224, %v2416
  %v2481 = vsub.f32 %v2225, %v2417
  %v2482 = vsub.f32 %v2226, %v2418
  %v2483 = vsub.f32 %v2227, %v2419
  %v2484 = vsub.f32 %v2228, %v2420
  %v2485 = vsub.f32 %v2229, %v2421
  %v2486 = vsub.f32 %v2230, %v2422
  %v2487 = vsub.f32 %v2231, %v2423
  %v2488 = vsub.f32 %v2232, %v2424
  %v2489 = vsub.f32 %v2233, %v2425
  %v2490 = vsub.f32 %v2234, %v2426
  %v2491 = vsub.f32 %v2235, %v2427
  %v2492 = vsub.f32 %v2236, %v2428
  %v2493 = vsub.f32 %v2237, %v2429
  %v2494 = vsub.f32 %v2238, %v2430
  %v2495 = vsub.f32 %v2239, %v2431
  %v2496 = vsub.f32 %v2240, %v2432
  %v2497 = vsub.f32 %v2241, %v2433
  %v2498 = vsub.f32 %v2242, %v2434
  %v2499 = vsub.f32 %v2243, %v2435
  %v2500 = vsub.f32 %v2244, %v2436
  %v2501 = vsub.f32 %v2245, %v2437
  %v2502 = vsub.f32 %v2246, %v2438
  %v2503 = vsub.f32 %v2247, %v2439
  %v2504 = vsub.f32 %v2248, %v2440
  %v2505 = vsub.f32 %v2249, %v2441
  %v2506 = vsub.f32 %v2250, %v2442
  %v2507 = vsub.f32 %v2251, %v2443
  %v2508 = vsub.f32 %v2252, %v2444
  %v2509 = vsub.f32 %v2253, %v2445
  %v2510 = vsub.f32 %v2254, %v2446
  %v2511 = vsub.f32 %v2255, %v2447
  %v2512 = vsub.f32 %v2256, %v2448
  %v2513 = vsub.f32 %v2257, %v2449
  %v2514 = vsub.f32 %v2258, %v2450
  %v2515 = vsub.f32 %v2259, %v2451
  %v2516 = vsub.f32 %v2260, %v2452
  %v2517 = vsub.f32 %v2261, %v2453
  %v2518 = vsub.f32 %v2262, %v2454
  %v2519 = vsub.f32 %v2263, %v2455
  %v2520 = vsub.f32 %v2264, %v2456
  %v2521 = vsub.f32 %v2265, %v2457
  %v2522 = vsub.f32 %v2266, %v2458
  %v2523 = vsub.f32 %v2267, %v2459
  %v2524 = vsub.f32 %v2268, %v2460
  %v2525 = vsub.f32 %v2269, %v2461
  %v2526 = vsub.f32 %v2270, %v2462
  %v2527 = vsub.f32 %v2271, %v2463
  %v2528 = vsub.f32 %v2272, %v2464
  %v2529 = vsub.f32 %v2273, %v2465
  %v2530 = vsub.f32 %v2274, %v2466
  %v2531 = vsub.f32 %v2275, %v2467
  %v2532 = vsub.f32 %v2276, %v2468
  %v2533 = vsub.f32 %v2277, %v2469
  %v2534 = vsub.f32 %v2278, %v2470
  %v2535 = vsub.f32 %v2279, %v2471
  %v2536 = vsub.f32 %v2280, %v2472
  %v2537 = vsub.f32 %v2281, %v2473
  %v2538 = vsub.f32 %v2282, %v2474
  %v2539 = vsub.f32 %v2283, %v2475
  %v2540 = vsub.f32 %v2284, %v2476
  %v2541 = vsub.f32 %v2285, %v2477
  %vm2542 = vcmask 130048
  %2543 = vst.msk [vmem:[%s4] sm:$0xff] %vm2542, %v2478
  %2544 = vst.msk [vmem:[%s4 + $0x8] sm:$0xff] %vm2542, %v2479
  %2545 = vst.msk [vmem:[%s4 + $0x10] sm:$0xff] %vm2542, %v2480
  %2546 = vst.msk [vmem:[%s4 + $0x18] sm:$0xff] %vm2542, %v2481
  %2547 = vst.msk [vmem:[%s4 + $0x20] sm:$0xff] %vm2542, %v2482
  %2548 = vst.msk [vmem:[%s4 + $0x28] sm:$0xff] %vm2542, %v2483
  %2549 = vst.msk [vmem:[%s4 + $0x30] sm:$0xff] %vm2542, %v2484
  %2550 = vst.msk [vmem:[%s4 + $0x38] sm:$0xff] %vm2542, %v2485
  %2551 = vst.msk [vmem:[%s4 + $0x40] sm:$0xff] %vm2542, %v2486
  %2552 = vst.msk [vmem:[%s4 + $0x48] sm:$0xff] %vm2542, %v2487
  %2553 = vst.msk [vmem:[%s4 + $0x50] sm:$0xff] %vm2542, %v2488
  %2554 = vst.msk [vmem:[%s4 + $0x58] sm:$0xff] %vm2542, %v2489
  %2555 = vst.msk [vmem:[%s4 + $0x60] sm:$0xff] %vm2542, %v2490
  %2556 = vst.msk [vmem:[%s4 + $0x68] sm:$0xff] %vm2542, %v2491
  %2557 = vst.msk [vmem:[%s4 + $0x70] sm:$0xff] %vm2542, %v2492
  %2558 = vst.msk [vmem:[%s4 + $0x78] sm:$0xff] %vm2542, %v2493
  %2559 = vst.msk [vmem:[%s4 + $0x80] sm:$0xff] %vm2542, %v2494
  %2560 = vst.msk [vmem:[%s4 + $0x88] sm:$0xff] %vm2542, %v2495
  %2561 = vst.msk [vmem:[%s4 + $0x90] sm:$0xff] %vm2542, %v2496
  %2562 = vst.msk [vmem:[%s4 + $0x98] sm:$0xff] %vm2542, %v2497
  %2563 = vst.msk [vmem:[%s4 + $0xa0] sm:$0xff] %vm2542, %v2498
  %2564 = vst.msk [vmem:[%s4 + $0xa8] sm:$0xff] %vm2542, %v2499
  %2565 = vst.msk [vmem:[%s4 + $0xb0] sm:$0xff] %vm2542, %v2500
  %2566 = vst.msk [vmem:[%s4 + $0xb8] sm:$0xff] %vm2542, %v2501
  %2567 = vst.msk [vmem:[%s4 + $0xc0] sm:$0xff] %vm2542, %v2502
  %2568 = vst.msk [vmem:[%s4 + $0xc8] sm:$0xff] %vm2542, %v2503
  %2569 = vst.msk [vmem:[%s4 + $0xd0] sm:$0xff] %vm2542, %v2504
  %2570 = vst.msk [vmem:[%s4 + $0xd8] sm:$0xff] %vm2542, %v2505
  %2571 = vst.msk [vmem:[%s4 + $0xe0] sm:$0xff] %vm2542, %v2506
  %2572 = vst.msk [vmem:[%s4 + $0xe8] sm:$0xff] %vm2542, %v2507
  %2573 = vst.msk [vmem:[%s4 + $0xf0] sm:$0xff] %vm2542, %v2508
  %2574 = vst.msk [vmem:[%s4 + $0xf8] sm:$0xff] %vm2542, %v2509
  %2575 = vst.msk [vmem:[%s4 + $0x100] sm:$0xff] %vm2542, %v2510
  %2576 = vst.msk [vmem:[%s4 + $0x108] sm:$0xff] %vm2542, %v2511
  %2577 = vst.msk [vmem:[%s4 + $0x110] sm:$0xff] %vm2542, %v2512
  %2578 = vst.msk [vmem:[%s4 + $0x118] sm:$0xff] %vm2542, %v2513
  %2579 = vst.msk [vmem:[%s4 + $0x120] sm:$0xff] %vm2542, %v2514
  %2580 = vst.msk [vmem:[%s4 + $0x128] sm:$0xff] %vm2542, %v2515
  %2581 = vst.msk [vmem:[%s4 + $0x130] sm:$0xff] %vm2542, %v2516
  %2582 = vst.msk [vmem:[%s4 + $0x138] sm:$0xff] %vm2542, %v2517
  %2583 = vst.msk [vmem:[%s4 + $0x140] sm:$0xff] %vm2542, %v2518
  %2584 = vst.msk [vmem:[%s4 + $0x148] sm:$0xff] %vm2542, %v2519
  %2585 = vst.msk [vmem:[%s4 + $0x150] sm:$0xff] %vm2542, %v2520
  %2586 = vst.msk [vmem:[%s4 + $0x158] sm:$0xff] %vm2542, %v2521
  %2587 = vst.msk [vmem:[%s4 + $0x160] sm:$0xff] %vm2542, %v2522
  %2588 = vst.msk [vmem:[%s4 + $0x168] sm:$0xff] %vm2542, %v2523
  %2589 = vst.msk [vmem:[%s4 + $0x170] sm:$0xff] %vm2542, %v2524
  %2590 = vst.msk [vmem:[%s4 + $0x178] sm:$0xff] %vm2542, %v2525
  %2591 = vst.msk [vmem:[%s4 + $0x180] sm:$0xff] %vm2542, %v2526
  %2592 = vst.msk [vmem:[%s4 + $0x188] sm:$0xff] %vm2542, %v2527
  %2593 = vst.msk [vmem:[%s4 + $0x190] sm:$0xff] %vm2542, %v2528
  %2594 = vst.msk [vmem:[%s4 + $0x198] sm:$0xff] %vm2542, %v2529
  %2595 = vst.msk [vmem:[%s4 + $0x1a0] sm:$0xff] %vm2542, %v2530
  %2596 = vst.msk [vmem:[%s4 + $0x1a8] sm:$0xff] %vm2542, %v2531
  %2597 = vst.msk [vmem:[%s4 + $0x1b0] sm:$0xff] %vm2542, %v2532
  %2598 = vst.msk [vmem:[%s4 + $0x1b8] sm:$0xff] %vm2542, %v2533
  %2599 = vst.msk [vmem:[%s4 + $0x1c0] sm:$0xff] %vm2542, %v2534
  %2600 = vst.msk [vmem:[%s4 + $0x1c8] sm:$0xff] %vm2542, %v2535
  %2601 = vst.msk [vmem:[%s4 + $0x1d0] sm:$0xff] %vm2542, %v2536
  %2602 = vst.msk [vmem:[%s4 + $0x1d8] sm:$0xff] %vm2542, %v2537
  %2603 = vst.msk [vmem:[%s4 + $0x1e0] sm:$0xff] %vm2542, %v2538
  %2604 = vst.msk [vmem:[%s4 + $0x1e8] sm:$0xff] %vm2542, %v2539
  %2605 = vst.msk [vmem:[%s4 + $0x1f0] sm:$0xff] %vm2542, %v2540
  %2606 = vst.msk [vmem:[%s4 + $0x1f8] sm:$0xff] %vm2542, %v2541
  // Predicated region
  $region18: #{tpu_custom_call.1} parent=0 // pred_check
    _
  $region19: #{tpu_custom_call.1} parent=0 // pred_check_branch
    %2608 = sbr.rel (0) target = $region21
  $region20: #{tpu_custom_call.1} parent=0 // pred_region
    _
  $region21: #{tpu_custom_call.1} parent=0 // pred_fallthru
    _
  // Predicated region
  $region22: #{tpu_custom_call.1} parent=0 // pred_check
    _
  $region23: #{tpu_custom_call.1} parent=0 // pred_check_branch
    %2610 = sbr.rel (0) target = $region25
  $region24: #{tpu_custom_call.1} parent=0 // pred_region
    _
  $region25: #{tpu_custom_call.1} parent=0 // pred_fallthru
    _

</llo_original>
